<compile_context>
chip_gen: v7x
topology: tpu7x:2x2x1
jax: 0.10.0
libtpu: 0.0.40
codegen_flags: <defaults>
</compile_context>

<pallas_src>
import functools

import jax
import jax.numpy as jnp
import numpy as np
from jax.experimental import pallas as pl
from jax.experimental.pallas import tpu as pltpu

N_SIGMA = 4.0           # remove_outliers n_sigma
EPS = 1e-6              # normalize_data epsilon added to std
_MAX_TC = 2048          # lane-tile upper bound


def _round_up(v, m):
    return (v + m - 1) // m * m


def _tpu_vmem_bytes():
    """Physical VMEM per TensorCore; conservative 64 MiB (v7x-sized) fallback
    so the scoped limit can never overshoot if the query is unavailable."""
    try:
        return int(getattr(pltpu.get_tpu_info(), "vmem_capacity_bytes",
                           64 * 1024 * 1024))
    except Exception:
        return 64 * 1024 * 1024


def _pick_col_tile(t, n_cols, in_itemsize):
    """Column tile (lane width) + scoped-VMEM limit for the x kernel.

    Largest 128-multiple tile that fits the VMEM budget.  On small-VMEM parts
    (v7x-like: 64 MiB, 2 TensorCores) keep >=2 grid blocks so both cores get
    work under dimension_semantics=('parallel',) and cap the scoped limit at
    32 MiB; on 128 MiB parts (v5e/v6e, single TC) use one big serial loop and
    a 64 MiB limit.  cdiv + masked boundary block handles any remainder.
    """
    vmem_phys = _tpu_vmem_bytes()
    small_vmem = vmem_phys <= 96 * 1024 * 1024
    vmem_limit = max(32 * 1024 * 1024, min(64 * 1024 * 1024, vmem_phys // 2))

    # Live VMEM per lane of tile: 2 double-buffered input tiles (native dtype),
    # 2 double-buffered f32 output tiles, ~6 materialized f32 temporaries in
    # the fused kernel (x upcast, keep, masked x, logabs, xo, ...).
    bytes_per_lane = t * (2 * in_itemsize + 8 * 4)
    cap = max(128, min(_MAX_TC, (vmem_limit // bytes_per_lane) // 128 * 128))

    if n_cols <= 128:
        return n_cols, vmem_limit                 # single partial-lane block
    tc = min(cap, (n_cols // 128) * 128)          # 128-multiple, <= n_cols
    if small_vmem:
        # v7x-like: guarantee >=2 grid blocks so both TensorCores get work.
        tc = min(tc, max(128, _round_up(-(-n_cols // 2), 128)))
    return tc, vmem_limit


# ------------------------------ Pallas kernels -------------------------------

def x_feature_kernel(scale_ref, x_ref, o_ref):
    """remove_outliers(4 sigma) -> normalize_data -> normalize_by_used_features_f.

    One (T, tc) column tile.  Every statistic is a per-column reduction over
    the sequence axis T (sublanes); columns ride the 128-wide lane axis.  All
    math is per-column, so unspecified lanes of a masked boundary block stay
    confined to their own (never-stored) columns.
    """
    x = x_ref[...].astype(jnp.float32)      # (T, tc); in-kernel upcast (bf16 ok)
    t = x.shape[0]
    scale = scale_ref[0]                    # SMEM scalar: H_total / H_used
    inv_t = 1.0 / t
    inv_tm1 = 1.0 / (t - 1.0)

    # pass 1: fused sum / sum-of-squares -> mean1 / std1 (ddof=1)
    s1 = jnp.sum(x, axis=0, keepdims=True)
    s2 = jnp.sum(x * x, axis=0, keepdims=True)
    mean1 = s1 * inv_t
    var1 = jnp.maximum((s2 - s1 * mean1) * inv_tm1, 0.0)
    cut1 = N_SIGMA * jnp.sqrt(var1)

    # pass 2: fused masked count / sum / sum-of-squares of in-range entries
    # (torch sets out-of-range entries to NaN and nan-reduces; keep stays bool).
    keep = jnp.logical_and(x >= mean1 - cut1, x <= mean1 + cut1)
    xk = jnp.where(keep, x, 0.0)
    cnt = jnp.sum(keep.astype(jnp.float32), axis=0, keepdims=True)
    s1k = jnp.sum(xk, axis=0, keepdims=True)
    s2k = jnp.sum(xk * x, axis=0, keepdims=True)   # == sum(where(keep, x*x, 0))
    # NOTE: cnt <= 1 for degenerate columns gives inf/NaN exactly like torch;
    # kept identical on purpose (confined to that column).
    mean2 = s1k / cnt
    var2 = jnp.maximum((s2k - s1k * mean2) / (cnt - 1.0), 0.0)
    cut2 = N_SIGMA * jnp.sqrt(var2)

    # pass 3: clamp-by-log (remove_outliers output) + fused sum/sumsq of xo
    logabs = jnp.log1p(jnp.abs(x))                 # log(1 + |x|) on the EUP
    xo = jnp.minimum(jnp.maximum(x, (mean2 - cut2) - logabs),
                     (mean2 + cut2) + logabs)
    s3 = jnp.sum(xo, axis=0, keepdims=True)
    s4 = jnp.sum(xo * xo, axis=0, keepdims=True)
    mean3 = s3 * inv_t
    var3 = jnp.maximum((s4 - s3 * mean3) * inv_tm1, 0.0)
    inv3 = 1.0 / (jnp.sqrt(var3) + EPS)            # (1, tc) row: exact on purpose

    # pass 4: normalize_data clip with normalize_by_used_features_f folded in:
    #   clip(z, -100, 100) * s == clip(z*s, -100*s, 100*s)  (s > 0, asserted in
    #   the wrapper).
    o_ref[...] = jnp.clip((xo - mean3) * (inv3 * scale),
                          -100.0 * scale, 100.0 * scale)


def y_target_kernel(y_ref, o_ref):
    """normalize_data -> RegressionNormalized (num_classes == 0 branch), on (T, B)."""
    y = y_ref[...].astype(jnp.float32)             # (T, B)
    t = y.shape[0]
    s1 = jnp.sum(y, axis=0, keepdims=True)
    s2 = jnp.sum(y * y, axis=0, keepdims=True)
    mean = s1 * (1.0 / t)
    var = jnp.maximum((s2 - s1 * mean) * (1.0 / (t - 1.0)), 0.0)
    yn = jnp.clip((y - mean) * (1.0 / (jnp.sqrt(var) + EPS)), -100.0, 100.0)
    mx = jnp.max(yn, axis=0, keepdims=True)
    mn = jnp.min(yn, axis=0, keepdims=True)
    # TODO(synk): a constant column yields 0/0 = NaN, identical to torch's
    # RegressionNormalized; kept intentionally.
    o_ref[...] = (yn - mn) * (1.0 / (mx - mn))


# ------------------------------ forward wrapper -------------------------------

@functools.partial(jax.jit, static_argnames=("num_features_total",))
def flexible_categorical_forward(x, y, scale, *, num_features_total):
    """x: (T, B, H_used) float dtype, y: (T, B), scale: (1,) f32 = H_total/H_used."""
    t, b, h_used = x.shape
    h_total = num_features_total

    n_cols = b * h_used
    x2d = x.reshape(t, n_cols)                     # trailing-dim collapse: free
    tc, vmem_limit = _pick_col_tile(t, n_cols, x.dtype.itemsize)

    x_out2d = pl.pallas_call(
        x_feature_kernel,
        out_shape=jax.ShapeDtypeStruct((t, n_cols), jnp.float32),
        grid=(pl.cdiv(n_cols, tc),),               # masked boundary block; no pad/slice
        in_specs=[
            pl.BlockSpec(memory_space=pltpu.MemorySpace.SMEM),   # scale scalar
            pl.BlockSpec((t, tc), lambda j: (0, j)),
            # TODO(synk): switch the x spec to pipeline_mode=pl.Buffered(3) only
            # if a trace shows exposed DMA after the pass fusion (extra VMEM).
        ],
        out_specs=pl.BlockSpec((t, tc), lambda j: (0, j)),
        compiler_params=pltpu.CompilerParams(
            dimension_semantics=("parallel",),
            vmem_limit_bytes=vmem_limit),
    )(scale, x2d)

    x_out = x_out2d.reshape(t, b, h_used)
    if h_total > h_used:
        # Write-only zero feature tail (torch's `cat([x, zeros], -1)`); the zero
        # columns never pass through the kernel.
        x_out = jnp.pad(x_out, ((0, 0), (0, 0), (0, h_total - h_used)))

    # y path: tiny single-block kernel directly on (T, B) -- no wrapper transposes.
    # TODO(synk): not fused into the x pallas_call -- a constant-index y output
    # block is unsafe under 'parallel' megacore splitting; the launch is tiny.
    y_out = pl.pallas_call(
        y_target_kernel,
        out_shape=jax.ShapeDtypeStruct((t, b), jnp.float32),
        grid=(1,),
        in_specs=[pl.BlockSpec((t, b), lambda i: (0, 0))],
        out_specs=pl.BlockSpec((t, b), lambda i: (0, 0)),
    )(y)

    return x_out, y_out


class FlexibleCategoricalPallas:
    """JAX/Pallas port of FlexibleCategorical.forward for the deterministic config above."""

    def __init__(self, get_batch, hyperparameters, args):
        self.h = {k: (v() if callable(v) else v) for k, v in hyperparameters.items()}
        self.args = args
        self.args_passed = {**self.args, "num_features": self.h["num_features_used"]}
        self.get_batch = get_batch
        assert self.h["num_classes"] == 0, "only RegressionNormalized path implemented"
        # TODO(synk): NaN-injection branches (drop_for_reason / drop_for_no_reason),
        #   categorical_feature_p feature replacement, check_is_compatible random
        #   permutation loop and normalize_labels relabel/rotate are data-dependent
        #   stochastic control flow; they are disabled in this configuration.

    def forward(self, batch_size):
        x, y, _ = self.get_batch(hyperparameters=self.h, **self.args_passed)
        h_total = self.args["num_features"]
        h_used = self.h["num_features_used"]
        # scale > 0 is required for the clip/scale fold inside the kernel.
        assert h_total >= h_used > 0, "num_features must be >= num_features_used > 0"
        scale = jnp.asarray([h_total / h_used], dtype=jnp.float32)
        x_out, y_out = flexible_categorical_forward(
            x, y, scale, num_features_total=h_total)
        return x_out, y_out, y_out


# ---------------- pure-JAX reference (mirrors the torch code) ----------------
def _ref_forward(x, y, num_features_used, num_features):
    def nanless_std(a):
        t = a.shape[0]
        m = jnp.mean(a, axis=0)
        return jnp.sqrt(jnp.sum((a - m[None]) ** 2, axis=0) / (t - 1))

    # remove_outliers
    m1, s1 = jnp.mean(x, axis=0), nanless_std(x)
    lo, up = m1 - 4 * s1, m1 + 4 * s1
    keep = ~((x > up[None]) | (x < lo[None]))
    cnt = keep.sum(axis=0)
    m2 = jnp.where(keep, x, 0.0).sum(axis=0) / cnt
    s2 = jnp.sqrt(jnp.where(keep, (x - m2[None]) ** 2, 0.0).sum(axis=0) / (cnt - 1))
    lo2, up2 = m2 - 4 * s2, m2 + 4 * s2
    la = jnp.log1p(jnp.abs(x))
    xo = jnp.maximum(-la + lo2[None], x)
    xo = jnp.minimum(la + up2[None], xo)
    # normalize_data
    m3, s3 = jnp.mean(xo, axis=0), nanless_std(xo) + EPS
    xn = jnp.clip((xo - m3[None]) / s3[None], -100.0, 100.0)
    # normalize_by_used_features_f + pad
    xn = xn / (num_features_used / num_features)
    T, B, Hu = x.shape
    xn = jnp.concatenate([xn, jnp.zeros((T, B, num_features - Hu))], -1)
    # y: normalize_data + RegressionNormalized
    my, sy = jnp.mean(y, axis=0), nanless_std(y) + EPS
    yn = jnp.clip((y - my[None]) / sy[None], -100.0, 100.0)
    yn = (yn - yn.min(axis=0)[None]) / (yn.max(axis=0)[None] - yn.min(axis=0)[None])
    return xn, yn, yn


if __name__ == "__main__":
    T, B = 128, 8                 # seq_len, batch_size
    H_USED, H_TOTAL = 30, 40      # num_features_used, num_features
    # (B*H_USED = 240 is deliberately NOT a multiple of 128: exercises the
    #  cdiv grid + masked boundary block path.)

    key = jax.random.PRNGKey(0)
    kx, ky = jax.random.split(key)

    def synthetic_get_batch(hyperparameters=None, device=None, seq_len=T,
                            num_features=H_USED, batch_size=B, **kwargs):
        x = jax.random.normal(kx, (seq_len, batch_size, num_features), jnp.float32) * 2.0 + 0.5
        y = jax.random.normal(ky, (seq_len, batch_size), jnp.float32)
        return x, y, y

    hyperparameters = {
        "num_classes": 0,
        "balanced": False,
        "multiclass_type": "rank",
        "output_multiclass_ordered_p": 0.5,
        "nan_prob_no_reason": 0.0,
        "nan_prob_a_reason": 0.0,
        "nan_prob_unknown_reason": 0.0,
        "nan_prob_unknown_reason_reason_prior": 0.5,
        "set_value_to_nan": 0.0,
        "categorical_feature_p": 0.0,
        "normalize_to_ranking": False,
        "normalize_by_used_features": True,
        "normalize_with_sqrt": False,
        "check_is_compatible": False,
        "normalize_labels": False,
        "num_features_used": H_USED,
        "seq_len_used": T,
    }
    args = {"device": None, "seq_len": T, "num_features": H_TOTAL,
            "batch_size": B, "single_eval_pos": T // 2}

    model = FlexibleCategoricalPallas(synthetic_get_batch, hyperparameters, args)
    x_out, y_out, y_copy = model.forward(batch_size=B)
    jax.block_until_ready((x_out, y_out, y_copy))

    # sanity check against pure-JAX reference of the torch math
    x_in, y_in, _ = synthetic_get_batch()
    x_ref, y_ref, _ = _ref_forward(x_in, y_in, H_USED, H_TOTAL)
    np.testing.assert_allclose(np.asarray(x_out), np.asarray(x_ref), rtol=1e-5, atol=1e-5)
    np.testing.assert_allclose(np.asarray(y_out), np.asarray(y_ref), rtol=1e-5, atol=1e-5)
    assert x_out.shape == (T, B, H_TOTAL) and y_out.shape == (T, B)

    print("KERNEL_OK")
</pallas_src>

<mosaic_0001>
module attributes {stable_mosaic.version = 11 : i64} {
  func.func @x_feature_kernel(%arg0: i32, %arg1: memref<1xf32, #tpu.memory_space<smem>>, %arg2: memref<128x128xf32, #tpu.memory_space<vmem>>, %arg3: memref<128x128xf32, #tpu.memory_space<vmem>>) attributes {dimension_semantics = [#tpu.dimension_semantics<parallel>], iteration_bounds = array<i64: 2>, scalar_prefetch = 0 : i64, scratch_operands = 0 : i64, tpu.core_type = #tpu.core_type<tc>, window_params = [{transform_indices = @transform_0, window_bounds = array<i64: 1>}, {transform_indices = @transform_1, window_bounds = array<i64: 128, 128>}, {transform_indices = @transform_2, window_bounds = array<i64: 128, 128>}]} {
    %c0 = arith.constant 0 : index
    %c0_0 = arith.constant 0 : index
    %0 = vector.load %arg2[%c0, %c0_0] : memref<128x128xf32, #tpu.memory_space<vmem>>, vector<128x128xf32>
    %c0_1 = arith.constant 0 : index
    %1 = memref.load %arg1[%c0_1] : memref<1xf32, #tpu.memory_space<smem>>
    %cst = arith.constant dense<0.000000e+00> : vector<128xf32>
    %2 = vector.multi_reduction <add>, %0, %cst [0] : vector<128x128xf32> to vector<128xf32>
    %3 = vector.shape_cast %2 : vector<128xf32> to vector<1x128xf32>
    %4 = arith.mulf %0, %0 : vector<128x128xf32>
    %cst_2 = arith.constant dense<0.000000e+00> : vector<128xf32>
    %5 = vector.multi_reduction <add>, %4, %cst_2 [0] : vector<128x128xf32> to vector<128xf32>
    %6 = vector.shape_cast %5 : vector<128xf32> to vector<1x128xf32>
    %cst_3 = arith.constant 7.812500e-03 : f32
    %7 = vector.broadcast %cst_3 : f32 to vector<1x128xf32>
    %8 = arith.mulf %3, %7 : vector<1x128xf32>
    %9 = arith.mulf %3, %8 : vector<1x128xf32>
    %10 = arith.subf %6, %9 : vector<1x128xf32>
    %cst_4 = arith.constant 0.00787401571 : f32
    %11 = vector.broadcast %cst_4 : f32 to vector<1x128xf32>
    %12 = arith.mulf %10, %11 : vector<1x128xf32>
    %cst_5 = arith.constant 0.000000e+00 : f32
    %13 = vector.broadcast %cst_5 : f32 to vector<1x128xf32>
    %14 = arith.maximumf %12, %13 : vector<1x128xf32>
    %15 = math.sqrt %14 : vector<1x128xf32>
    %cst_6 = arith.constant 4.000000e+00 : f32
    %16 = vector.broadcast %cst_6 : f32 to vector<1x128xf32>
    %17 = arith.mulf %16, %15 : vector<1x128xf32>
    %18 = arith.subf %8, %17 : vector<1x128xf32>
    %19 = vector.broadcast %18 : vector<1x128xf32> to vector<128x128xf32>
    %20 = arith.cmpf oge, %0, %19 : vector<128x128xf32>
    %21 = arith.addf %8, %17 : vector<1x128xf32>
    %22 = vector.broadcast %21 : vector<1x128xf32> to vector<128x128xf32>
    %23 = arith.cmpf ole, %0, %22 : vector<128x128xf32>
    %24 = arith.andi %20, %23 : vector<128x128xi1>
    %cst_7 = arith.constant 0.000000e+00 : f32
    %25 = vector.broadcast %cst_7 : f32 to vector<128x128xf32>
    %26 = arith.select %24, %0, %25 : vector<128x128xi1>, vector<128x128xf32>
    %27 = arith.extui %24 : vector<128x128xi1> to vector<128x128xi32>
    %28 = arith.sitofp %27 : vector<128x128xi32> to vector<128x128xf32>
    %cst_8 = arith.constant dense<0.000000e+00> : vector<128xf32>
    %29 = vector.multi_reduction <add>, %28, %cst_8 [0] : vector<128x128xf32> to vector<128xf32>
    %30 = vector.shape_cast %29 : vector<128xf32> to vector<1x128xf32>
    %cst_9 = arith.constant dense<0.000000e+00> : vector<128xf32>
    %31 = vector.multi_reduction <add>, %26, %cst_9 [0] : vector<128x128xf32> to vector<128xf32>
    %32 = vector.shape_cast %31 : vector<128xf32> to vector<1x128xf32>
    %33 = arith.mulf %26, %0 : vector<128x128xf32>
    %cst_10 = arith.constant dense<0.000000e+00> : vector<128xf32>
    %34 = vector.multi_reduction <add>, %33, %cst_10 [0] : vector<128x128xf32> to vector<128xf32>
    %35 = vector.shape_cast %34 : vector<128xf32> to vector<1x128xf32>
    %36 = arith.divf %32, %30 : vector<1x128xf32>
    %37 = arith.mulf %32, %36 : vector<1x128xf32>
    %38 = arith.subf %35, %37 : vector<1x128xf32>
    %cst_11 = arith.constant 1.000000e+00 : f32
    %39 = vector.broadcast %cst_11 : f32 to vector<1x128xf32>
    %40 = arith.subf %30, %39 : vector<1x128xf32>
    %41 = arith.divf %38, %40 : vector<1x128xf32>
    %cst_12 = arith.constant 0.000000e+00 : f32
    %42 = vector.broadcast %cst_12 : f32 to vector<1x128xf32>
    %43 = arith.maximumf %41, %42 : vector<1x128xf32>
    %44 = math.sqrt %43 : vector<1x128xf32>
    %cst_13 = arith.constant 4.000000e+00 : f32
    %45 = vector.broadcast %cst_13 : f32 to vector<1x128xf32>
    %46 = arith.mulf %45, %44 : vector<1x128xf32>
    %47 = math.absf %0 : vector<128x128xf32>
    %48 = math.log1p %47 : vector<128x128xf32>
    %49 = arith.subf %36, %46 : vector<1x128xf32>
    %50 = vector.broadcast %49 : vector<1x128xf32> to vector<128x128xf32>
    %51 = arith.subf %50, %48 : vector<128x128xf32>
    %52 = arith.maximumf %0, %51 : vector<128x128xf32>
    %53 = arith.addf %36, %46 : vector<1x128xf32>
    %54 = vector.broadcast %53 : vector<1x128xf32> to vector<128x128xf32>
    %55 = arith.addf %54, %48 : vector<128x128xf32>
    %56 = arith.minimumf %52, %55 : vector<128x128xf32>
    %cst_14 = arith.constant dense<0.000000e+00> : vector<128xf32>
    %57 = vector.multi_reduction <add>, %56, %cst_14 [0] : vector<128x128xf32> to vector<128xf32>
    %58 = vector.shape_cast %57 : vector<128xf32> to vector<1x128xf32>
    %59 = arith.mulf %56, %56 : vector<128x128xf32>
    %cst_15 = arith.constant dense<0.000000e+00> : vector<128xf32>
    %60 = vector.multi_reduction <add>, %59, %cst_15 [0] : vector<128x128xf32> to vector<128xf32>
    %61 = vector.shape_cast %60 : vector<128xf32> to vector<1x128xf32>
    %cst_16 = arith.constant 7.812500e-03 : f32
    %62 = vector.broadcast %cst_16 : f32 to vector<1x128xf32>
    %63 = arith.mulf %58, %62 : vector<1x128xf32>
    %64 = arith.mulf %58, %63 : vector<1x128xf32>
    %65 = arith.subf %61, %64 : vector<1x128xf32>
    %cst_17 = arith.constant 0.00787401571 : f32
    %66 = vector.broadcast %cst_17 : f32 to vector<1x128xf32>
    %67 = arith.mulf %65, %66 : vector<1x128xf32>
    %cst_18 = arith.constant 0.000000e+00 : f32
    %68 = vector.broadcast %cst_18 : f32 to vector<1x128xf32>
    %69 = arith.maximumf %67, %68 : vector<1x128xf32>
    %70 = math.sqrt %69 : vector<1x128xf32>
    %cst_19 = arith.constant 9.99999997E-7 : f32
    %71 = vector.broadcast %cst_19 : f32 to vector<1x128xf32>
    %72 = arith.addf %70, %71 : vector<1x128xf32>
    %cst_20 = arith.constant 1.000000e+00 : f32
    %73 = vector.broadcast %cst_20 : f32 to vector<1x128xf32>
    %74 = arith.divf %73, %72 : vector<1x128xf32>
    %75 = vector.broadcast %63 : vector<1x128xf32> to vector<128x128xf32>
    %76 = arith.subf %56, %75 : vector<128x128xf32>
    %77 = vector.broadcast %1 : f32 to vector<1x128xf32>
    %78 = arith.mulf %74, %77 : vector<1x128xf32>
    %79 = vector.broadcast %78 : vector<1x128xf32> to vector<128x128xf32>
    %80 = arith.mulf %76, %79 : vector<128x128xf32>
    %cst_21 = arith.constant -1.000000e+02 : f32
    %81 = arith.mulf %cst_21, %1 : f32
    %cst_22 = arith.constant 1.000000e+02 : f32
    %82 = arith.mulf %cst_22, %1 : f32
    %83 = vector.broadcast %81 : f32 to vector<128x128xf32>
    %84 = arith.maximumf %83, %80 : vector<128x128xf32>
    %85 = vector.broadcast %82 : f32 to vector<128x128xf32>
    %86 = arith.minimumf %85, %84 : vector<128x128xf32>
    %c0_23 = arith.constant 0 : index
    %c0_24 = arith.constant 0 : index
    %87 = vector.load %arg3[%c0_23, %c0_24] : memref<128x128xf32, #tpu.memory_space<vmem>>, vector<128x128xf32>
    tpu.vector_store %arg3[%c0_23, %c0_24], %86 {strides = array<i32>} : memref<128x128xf32, #tpu.memory_space<vmem>>, vector<128x128xf32>,
    return
  }
  func.func @transform_0(%arg0: i32) -> i32 {
    %c0_i32 = arith.constant 0 : i32
    %c0_i32_0 = arith.constant 0 : i32
    return %c0_i32 : i32
  }
  func.func @transform_1(%arg0: i32) -> (i32, i32) {
    %c0_i32 = arith.constant 0 : i32
    %c0_i32_0 = arith.constant 0 : i32
    return %c0_i32, %arg0 : i32, i32
  }
  func.func @transform_2(%arg0: i32) -> (i32, i32) {
    %c0_i32 = arith.constant 0 : i32
    %c0_i32_0 = arith.constant 0 : i32
    return %c0_i32, %arg0 : i32, i32
  }
}

module attributes {stable_mosaic.version = 11 : i64} {
  func.func @y_target_kernel(%arg0: i32, %arg1: memref<128x8xf32, #tpu.memory_space<vmem>>, %arg2: memref<128x8xf32, #tpu.memory_space<vmem>>) attributes {dimension_semantics = [#tpu.dimension_semantics<arbitrary>], iteration_bounds = array<i64: 1>, scalar_prefetch = 0 : i64, scratch_operands = 0 : i64, tpu.core_type = #tpu.core_type<tc>, window_params = [{pipeline_mode = #tpu.pipeline_mode<synchronous>, transform_indices = @transform_0, window_bounds = array<i64: 128, 8>}, {pipeline_mode = #tpu.pipeline_mode<synchronous>, transform_indices = @transform_1, window_bounds = array<i64: 128, 8>}]} {
    %c0 = arith.constant 0 : index
    %c0_0 = arith.constant 0 : index
    %0 = vector.load %arg1[%c0, %c0_0] : memref<128x8xf32, #tpu.memory_space<vmem>>, vector<128x8xf32>
    %cst = arith.constant dense<0.000000e+00> : vector<8xf32>
    %1 = vector.multi_reduction <add>, %0, %cst [0] : vector<128x8xf32> to vector<8xf32>
    %2 = vector.shape_cast %1 : vector<8xf32> to vector<1x8xf32>
    %3 = arith.mulf %0, %0 : vector<128x8xf32>
    %cst_1 = arith.constant dense<0.000000e+00> : vector<8xf32>
    %4 = vector.multi_reduction <add>, %3, %cst_1 [0] : vector<128x8xf32> to vector<8xf32>
    %5 = vector.shape_cast %4 : vector<8xf32> to vector<1x8xf32>
    %cst_2 = arith.constant 7.812500e-03 : f32
    %6 = vector.broadcast %cst_2 : f32 to vector<1x8xf32>
    %7 = arith.mulf %2, %6 : vector<1x8xf32>
    %8 = arith.mulf %2, %7 : vector<1x8xf32>
    %9 = arith.subf %5, %8 : vector<1x8xf32>
    %cst_3 = arith.constant 0.00787401571 : f32
    %10 = vector.broadcast %cst_3 : f32 to vector<1x8xf32>
    %11 = arith.mulf %9, %10 : vector<1x8xf32>
    %cst_4 = arith.constant 0.000000e+00 : f32
    %12 = vector.broadcast %cst_4 : f32 to vector<1x8xf32>
    %13 = arith.maximumf %11, %12 : vector<1x8xf32>
    %14 = vector.broadcast %7 : vector<1x8xf32> to vector<128x8xf32>
    %15 = arith.subf %0, %14 : vector<128x8xf32>
    %16 = math.sqrt %13 : vector<1x8xf32>
    %cst_5 = arith.constant 9.99999997E-7 : f32
    %17 = vector.broadcast %cst_5 : f32 to vector<1x8xf32>
    %18 = arith.addf %16, %17 : vector<1x8xf32>
    %cst_6 = arith.constant 1.000000e+00 : f32
    %19 = vector.broadcast %cst_6 : f32 to vector<1x8xf32>
    %20 = arith.divf %19, %18 : vector<1x8xf32>
    %21 = vector.broadcast %20 : vector<1x8xf32> to vector<128x8xf32>
    %22 = arith.mulf %15, %21 : vector<128x8xf32>
    %cst_7 = arith.constant -1.000000e+02 : f32
    %cst_8 = arith.constant 1.000000e+02 : f32
    %23 = vector.broadcast %cst_7 : f32 to vector<128x8xf32>
    %24 = arith.maximumf %23, %22 : vector<128x8xf32>
    %25 = vector.broadcast %cst_8 : f32 to vector<128x8xf32>
    %26 = arith.minimumf %25, %24 : vector<128x8xf32>
    %cst_9 = arith.constant dense<0xFF800000> : vector<8xf32>
    %27 = vector.multi_reduction <maximumf>, %26, %cst_9 [0] : vector<128x8xf32> to vector<8xf32>
    %28 = vector.shape_cast %27 : vector<8xf32> to vector<1x8xf32>
    %cst_10 = arith.constant dense<0x7F800000> : vector<8xf32>
    %29 = vector.multi_reduction <minimumf>, %26, %cst_10 [0] : vector<128x8xf32> to vector<8xf32>
    %30 = vector.shape_cast %29 : vector<8xf32> to vector<1x8xf32>
    %31 = vector.broadcast %30 : vector<1x8xf32> to vector<128x8xf32>
    %32 = arith.subf %26, %31 : vector<128x8xf32>
    %33 = arith.subf %28, %30 : vector<1x8xf32>
    %cst_11 = arith.constant 1.000000e+00 : f32
    %34 = vector.broadcast %cst_11 : f32 to vector<1x8xf32>
    %35 = arith.divf %34, %33 : vector<1x8xf32>
    %36 = vector.broadcast %35 : vector<1x8xf32> to vector<128x8xf32>
    %37 = arith.mulf %32, %36 : vector<128x8xf32>
    %c0_12 = arith.constant 0 : index
    %c0_13 = arith.constant 0 : index
    %38 = vector.load %arg2[%c0_12, %c0_13] : memref<128x8xf32, #tpu.memory_space<vmem>>, vector<128x8xf32>
    tpu.vector_store %arg2[%c0_12, %c0_13], %37 {strides = array<i32>} : memref<128x8xf32, #tpu.memory_space<vmem>>, vector<128x8xf32>,
    return
  }
  func.func @transform_0(%arg0: i32) -> (i32, i32) {
    %c0_i32 = arith.constant 0 : i32
    %c0_i32_0 = arith.constant 0 : i32
    %c0_i32_1 = arith.constant 0 : i32
    return %c0_i32, %c0_i32_0 : i32, i32
  }
  func.func @transform_1(%arg0: i32) -> (i32, i32) {
    %c0_i32 = arith.constant 0 : i32
    %c0_i32_0 = arith.constant 0 : i32
    %c0_i32_1 = arith.constant 0 : i32
    return %c0_i32, %c0_i32_0 : i32, i32
  }
}

</mosaic_0001>

<llo_original>
// kernel: flexible_categorical_forward.2
$region0: #{flexible_categorical_forward.2}
  #allocation0 [shape = 'u32[]', space=smem, size = 0x4, offset = 0x4, fixed_abs, tag = 'smem constant byte address 0x4 - core index']
  #allocation1 [shape = 'u32[144,128]{1,0:T(1,128)}', space=vmem, size = 0x12000, scoped, tag = 'internal scratch']
  #allocation2 [shape = 'f32[1]{0:T(128)S(6)}', space=smem, size = 0x200, scoped, tag = 'scoped memory for flexible_categorical_forward.2']
  %s0 = inlined_call_operand.<no memory space> [shape: f32[1], index: 0, kind: input, shape index: {}]
  %s1 = inlined_call_operand.vmem [shape: f32[128,240], index: 1, kind: input, shape index: {}]
  %s2 = inlined_call_operand.vmem [shape: f32[128,240], index: 2, kind: output, shape index: {}]
  %s3 = sld [smem:[#allocation0]]
  $region113: #{flexible_categorical_forward.2} parent=0
    _
  %s5 = ssub.s32 1, %s3
  %s6 = scalar_select 0, %s5, %s3
  %7 = sst [smem:[#allocation2]] %s0
  $region1: #{flexible_categorical_forward.2} parent=0
    #allocation3 [shape = 'u8[131072]{0}', space=vmem, size = 0x20000, scoped, tag = 'input window, operand 1']
    #allocation4 [shape = 'u8[131072]{0}', space=vmem, size = 0x20000, scoped, tag = 'output window, operand 0']
    loop: start=0, step=1, limit=4
    $region2: #{flexible_categorical_forward.2} parent=1 // loop_pre_header
      _
    $region3: #{flexible_categorical_forward.2} parent=1 // loop_header
      %s9 = sphi 0, %s13
      %p10 = scmp.ge.s32.totalorder %s9, 4
      %s17 = sphi 0, %s17
      %s19 = sphi 0, %s17
      %s20 = sphi 0, %s19
      %s34 = sphi 0, %s20
      %s40 = sphi 0, %s42
      %s43 = sphi 0, %s40
      %s44 = sphi 0, %s43
      %s60 = sphi 0, %s44
      %s66 = sphi 0, %s68
      %s69 = sphi 0, %s66
      %s70 = sphi 0, %s69
      %s86 = sphi 0, %s70
    $region4: #{flexible_categorical_forward.2} parent=1 // loop_header_branch
      %12 = sbr.rel (%p10) target = $region8
    $region5: #{flexible_categorical_forward.2} parent=1 // loop_body
      %s14 = ssub.s32 %s9, 1
      %s15 = ssub.s32 %s9, 2
      %s16 = sadd.s32 %s9, 1
      %s18 = sadd.s32 %s17, 1
      %p21 = scmp.eq.s32.totalorder %s9, 1
      %p22 = scmp.ne.s32.totalorder %s17, %s19
      %p23 = scmp.eq.s32.totalorder %s9, 0
      %p24 = por %p22, %p23
      %p25 = scmp.ne.s32.totalorder %s17, %s19
      %p26 = scmp.eq.s32.totalorder %s14, 1
      %p27 = por %p25, %p26
      %p28 = scmp.ne.s32.totalorder %s19, %s20
      %p29 = scmp.eq.s32.totalorder %s14, 0
      %p30 = por %p28, %p29
      %p31 = scmp.ne.s32.totalorder %s19, %s20
      %p32 = scmp.eq.s32.totalorder %s15, 1
      %p33 = por %p31, %p32
      %p35 = scmp.ne.s32.totalorder %s20, %s34
      %p36 = scmp.eq.s32.totalorder %s15, 0
      %p37 = por %p35, %p36
      %s38 = ssub.s32 %s9, %s16
      %p39 = scmp.eq.s32.totalorder %s38, 0
      %s41 = sadd.s32 %s40, 1
      %s42 = scalar_select %p39, %s40, %s41
      %p45 = pneg %p39
      %p46 = scmp.eq.s32.totalorder %s9, 1
      %p47 = por %p45, %p46
      %p48 = scmp.ne.s32.totalorder %s40, %s43
      %p49 = scmp.eq.s32.totalorder %s9, 0
      %p50 = por %p48, %p49
      %p51 = scmp.ne.s32.totalorder %s40, %s43
      %p52 = scmp.eq.s32.totalorder %s14, 1
      %p53 = por %p51, %p52
      %p54 = scmp.ne.s32.totalorder %s43, %s44
      %p55 = scmp.eq.s32.totalorder %s14, 0
      %p56 = por %p54, %p55
      %p57 = scmp.ne.s32.totalorder %s43, %s44
      %p58 = scmp.eq.s32.totalorder %s15, 1
      %p59 = por %p57, %p58
      %p61 = scmp.ne.s32.totalorder %s44, %s60
      %p62 = scmp.eq.s32.totalorder %s15, 0
      %p63 = por %p61, %p62
      %s64 = ssub.s32 %s9, %s16
      %p65 = scmp.eq.s32.totalorder %s64, 0
      %s67 = sadd.s32 %s66, 1
      %s68 = scalar_select %p65, %s66, %s67
      %p71 = pneg %p65
      %p72 = scmp.eq.s32.totalorder %s9, 1
      %p73 = por %p71, %p72
      %p74 = scmp.ne.s32.totalorder %s66, %s69
      %p75 = scmp.eq.s32.totalorder %s9, 0
      %p76 = por %p74, %p75
      %p77 = scmp.ne.s32.totalorder %s66, %s69
      %p78 = scmp.eq.s32.totalorder %s14, 1
      %p79 = por %p77, %p78
      %p80 = scmp.ne.s32.totalorder %s69, %s70
      %p81 = scmp.eq.s32.totalorder %s14, 0
      %p82 = por %p80, %p81
      %p83 = scmp.ne.s32.totalorder %s69, %s70
      %p84 = scmp.eq.s32.totalorder %s15, 1
      %p85 = por %p83, %p84
      %p87 = scmp.ne.s32.totalorder %s70, %s86
      %p88 = scmp.eq.s32.totalorder %s15, 0
      %p89 = por %p87, %p88
      %p90 = scmp.le.s32.totalorder 1, %s9
      %p91 = scmp.lt.s32.totalorder %s9, 3
      %p92 = pnand %p90, %p91
      %p93 = pneg %p92
      // Predicated region
      $region9: #{flexible_categorical_forward.2} parent=5 // pred_check
        _
      $region10: #{flexible_categorical_forward.2} parent=5 // pred_check_branch
        %95 = sbr.rel (%p92) target = $region12
      $region11: #{flexible_categorical_forward.2} parent=5 // pred_region
        %s96 = ssub.s32 %s9, 1
        // Predicated region
        $region13: #{flexible_categorical_forward.2} parent=11 // pred_check
          %p97 = pneg %p30
        $region14: #{flexible_categorical_forward.2} parent=11 // pred_check_branch
          %99 = sbr.rel (%p97) target = $region16
        $region15: #{flexible_categorical_forward.2} parent=11 // pred_region
          _
        $region16: #{flexible_categorical_forward.2} parent=11 // pred_fallthru
          _
      $region12: #{flexible_categorical_forward.2} parent=5 // pred_fallthru
        _
      %p100 = scmp.lt.s32.totalorder %s9, 2
      // Predicated region
      $region17: #{flexible_categorical_forward.2} parent=5 // pred_check
        %p101 = pneg %p100
      $region18: #{flexible_categorical_forward.2} parent=5 // pred_check_branch
        %103 = sbr.rel (%p101) target = $region20
      $region19: #{flexible_categorical_forward.2} parent=5 // pred_region
        // Predicated region
        $region21: #{flexible_categorical_forward.2} parent=19 // pred_check
          %p104 = pneg %p50
        $region22: #{flexible_categorical_forward.2} parent=19 // pred_check_branch
          %106 = sbr.rel (%p104) target = $region24
        $region23: #{flexible_categorical_forward.2} parent=19 // pred_region
          %s107 = sand.u32 %s40, 1
          %s108 = sand.u32 %s40, 1
          %s109 = smul.addr %s108, 128
          %s110 = scalar_lea.vmem [#allocation3], %s109
          %s111 = smul.addr %s9, 8
          %s112 = scalar_lea.vmem %s1, %s111
          // Predicated region
          $region25: #{flexible_categorical_forward.2} parent=23 // pred_check
            _
          $region26: #{flexible_categorical_forward.2} parent=23 // pred_check_branch
            %114 = sbr.rel (0) target = $region28
          $region27: #{flexible_categorical_forward.2} parent=23 // pred_region
            // Predicated region
            $region29: #{flexible_categorical_forward.2} parent=27 // pred_check
              _
            $region30: #{flexible_categorical_forward.2} parent=27 // pred_check_branch
              %116 = sbr.rel (0) target = $region32
            $region31: #{flexible_categorical_forward.2} parent=27 // pred_region
              // Predicated region
              $region44: #{flexible_categorical_forward.2} parent=31 // pred_check
                _
              $region45: #{flexible_categorical_forward.2} parent=31 // pred_check_branch
                %161 = sbr.rel (0) target = $region47
              $region46: #{flexible_categorical_forward.2} parent=31 // pred_region
                loop: start=0, step=1, limit=1
                $region48: #{flexible_categorical_forward.2} parent=46 // loop_pre_header
                  _
                $region49: #{flexible_categorical_forward.2} parent=46 // loop_header
                  %s163 = sphi 0, %s167
                  %p164 = scmp.ge.s32.totalorder %s163, 1
                  %s168 = sphi %s112, %s112
                  %s169 = sphi %s110, %s110
                $region50: #{flexible_categorical_forward.2} parent=46 // loop_header_branch
                  %166 = sbr.rel (%p164) target = $region54
                $region51: #{flexible_categorical_forward.2} parent=46 // loop_body
                  %v170 = vld [vmem:[%s168] sm:$0xff]
                  %171 = vst [vmem:[%s169] sm:$0xff] %v170
                  %v172 = vld [vmem:[%s168 + $0x10] sm:$0xff]
                  %173 = vst [vmem:[%s169 + $0x8] sm:$0xff] %v172
                  %v174 = vld [vmem:[%s168 + $0x20] sm:$0xff]
                  %175 = vst [vmem:[%s169 + $0x10] sm:$0xff] %v174
                  %v176 = vld [vmem:[%s168 + $0x30] sm:$0xff]
                  %177 = vst [vmem:[%s169 + $0x18] sm:$0xff] %v176
                  %v178 = vld [vmem:[%s168 + $0x40] sm:$0xff]
                  %179 = vst [vmem:[%s169 + $0x20] sm:$0xff] %v178
                  %v180 = vld [vmem:[%s168 + $0x50] sm:$0xff]
                  %181 = vst [vmem:[%s169 + $0x28] sm:$0xff] %v180
                  %v182 = vld [vmem:[%s168 + $0x60] sm:$0xff]
                  %183 = vst [vmem:[%s169 + $0x30] sm:$0xff] %v182
                  %v184 = vld [vmem:[%s168 + $0x70] sm:$0xff]
                  %185 = vst [vmem:[%s169 + $0x38] sm:$0xff] %v184
                  %v186 = vld [vmem:[%s168 + $0x80] sm:$0xff]
                  %187 = vst [vmem:[%s169 + $0x40] sm:$0xff] %v186
                  %v188 = vld [vmem:[%s168 + $0x90] sm:$0xff]
                  %189 = vst [vmem:[%s169 + $0x48] sm:$0xff] %v188
                  %v190 = vld [vmem:[%s168 + $0xa0] sm:$0xff]
                  %191 = vst [vmem:[%s169 + $0x50] sm:$0xff] %v190
                  %v192 = vld [vmem:[%s168 + $0xb0] sm:$0xff]
                  %193 = vst [vmem:[%s169 + $0x58] sm:$0xff] %v192
                  %v194 = vld [vmem:[%s168 + $0xc0] sm:$0xff]
                  %195 = vst [vmem:[%s169 + $0x60] sm:$0xff] %v194
                  %v196 = vld [vmem:[%s168 + $0xd0] sm:$0xff]
                  %197 = vst [vmem:[%s169 + $0x68] sm:$0xff] %v196
                  %v198 = vld [vmem:[%s168 + $0xe0] sm:$0xff]
                  %199 = vst [vmem:[%s169 + $0x70] sm:$0xff] %v198
                  %v200 = vld [vmem:[%s168 + $0xf0] sm:$0xff]
                  %201 = vst [vmem:[%s169 + $0x78] sm:$0xff] %v200
                $region52: #{flexible_categorical_forward.2} parent=46 // loop_footer
                  %s167 = sadd.s32 1, %s163
                $region53: #{flexible_categorical_forward.2} parent=46 // loop_footer_branch
                  %162 = sbr.rel target = $region49
                $region54: #{flexible_categorical_forward.2} parent=46 // loop_exit
                  _
              $region47: #{flexible_categorical_forward.2} parent=31 // pred_fallthru
                _
              // Predicated region
              $region55: #{flexible_categorical_forward.2} parent=31 // pred_check
                _
              $region56: #{flexible_categorical_forward.2} parent=31 // pred_check_branch
                %203 = sbr.rel target = $region58
              $region57: #{flexible_categorical_forward.2} parent=31 // pred_region
                _
              $region58: #{flexible_categorical_forward.2} parent=31 // pred_fallthru
                _
            $region32: #{flexible_categorical_forward.2} parent=27 // pred_fallthru
              _
            // Predicated region
            $region33: #{flexible_categorical_forward.2} parent=27 // pred_check
              _
            $region34: #{flexible_categorical_forward.2} parent=27 // pred_check_branch
              %118 = sbr.rel target = $region36
            $region35: #{flexible_categorical_forward.2} parent=27 // pred_region
              loop: start=0, step=1, limit=1
              $region37: #{flexible_categorical_forward.2} parent=35 // loop_pre_header
                _
              $region38: #{flexible_categorical_forward.2} parent=35 // loop_header
                %s121 = sphi 0, %s125
                %p122 = scmp.ge.s32.totalorder %s121, 1
                %s126 = sphi %s112, %s112
                %s127 = sphi %s110, %s110
              $region39: #{flexible_categorical_forward.2} parent=35 // loop_header_branch
                %124 = sbr.rel (%p122) target = $region43
              $region40: #{flexible_categorical_forward.2} parent=35 // loop_body
                %v128 = vld [vmem:[%s126] sm:$0xff]
                %129 = vst [vmem:[%s127] sm:$0xff] %v128
                %v130 = vld [vmem:[%s126 + $0x10] sm:$0xff]
                %131 = vst [vmem:[%s127 + $0x8] sm:$0xff] %v130
                %v132 = vld [vmem:[%s126 + $0x20] sm:$0xff]
                %133 = vst [vmem:[%s127 + $0x10] sm:$0xff] %v132
                %v134 = vld [vmem:[%s126 + $0x30] sm:$0xff]
                %135 = vst [vmem:[%s127 + $0x18] sm:$0xff] %v134
                %v136 = vld [vmem:[%s126 + $0x40] sm:$0xff]
                %137 = vst [vmem:[%s127 + $0x20] sm:$0xff] %v136
                %v138 = vld [vmem:[%s126 + $0x50] sm:$0xff]
                %139 = vst [vmem:[%s127 + $0x28] sm:$0xff] %v138
                %v140 = vld [vmem:[%s126 + $0x60] sm:$0xff]
                %141 = vst [vmem:[%s127 + $0x30] sm:$0xff] %v140
                %v142 = vld [vmem:[%s126 + $0x70] sm:$0xff]
                %143 = vst [vmem:[%s127 + $0x38] sm:$0xff] %v142
                %v144 = vld [vmem:[%s126 + $0x80] sm:$0xff]
                %145 = vst [vmem:[%s127 + $0x40] sm:$0xff] %v144
                %v146 = vld [vmem:[%s126 + $0x90] sm:$0xff]
                %147 = vst [vmem:[%s127 + $0x48] sm:$0xff] %v146
                %v148 = vld [vmem:[%s126 + $0xa0] sm:$0xff]
                %149 = vst [vmem:[%s127 + $0x50] sm:$0xff] %v148
                %v150 = vld [vmem:[%s126 + $0xb0] sm:$0xff]
                %151 = vst [vmem:[%s127 + $0x58] sm:$0xff] %v150
                %v152 = vld [vmem:[%s126 + $0xc0] sm:$0xff]
                %153 = vst [vmem:[%s127 + $0x60] sm:$0xff] %v152
                %v154 = vld [vmem:[%s126 + $0xd0] sm:$0xff]
                %155 = vst [vmem:[%s127 + $0x68] sm:$0xff] %v154
                %v156 = vld [vmem:[%s126 + $0xe0] sm:$0xff]
                %157 = vst [vmem:[%s127 + $0x70] sm:$0xff] %v156
                %v158 = vld [vmem:[%s126 + $0xf0] sm:$0xff]
                %159 = vst [vmem:[%s127 + $0x78] sm:$0xff] %v158
              $region41: #{flexible_categorical_forward.2} parent=35 // loop_footer
                %s125 = sadd.s32 1, %s121
              $region42: #{flexible_categorical_forward.2} parent=35 // loop_footer_branch
                %120 = sbr.rel target = $region38
              $region43: #{flexible_categorical_forward.2} parent=35 // loop_exit
                _
            $region36: #{flexible_categorical_forward.2} parent=27 // pred_fallthru
              _
          $region28: #{flexible_categorical_forward.2} parent=23 // pred_fallthru
            _
          %204 = vnop
        $region24: #{flexible_categorical_forward.2} parent=19 // pred_fallthru
          _
      $region20: #{flexible_categorical_forward.2} parent=5 // pred_fallthru
        _
      %p205 = scmp.le.s32.totalorder 1, %s9
      %p206 = scmp.lt.s32.totalorder %s9, 3
      %p207 = pnand %p205, %p206
      %p208 = pneg %p207
      // Predicated region
      $region59: #{flexible_categorical_forward.2} parent=5 // pred_check
        _
      $region60: #{flexible_categorical_forward.2} parent=5 // pred_check_branch
        %210 = sbr.rel (%p207) target = $region62
      $region61: #{flexible_categorical_forward.2} parent=5 // pred_region
        %s211 = ssub.s32 %s9, 1
        %s212 = sand.u32 %s43, 1
        %s213 = sand.u32 %s43, 1
        %s214 = smul.addr %s213, 128
        %s215 = scalar_lea.vmem [#allocation3], %s214
        // Predicated region
        $region63: #{flexible_categorical_forward.2} parent=61 // pred_check
          %p216 = pneg %p56
        $region64: #{flexible_categorical_forward.2} parent=61 // pred_check_branch
          %218 = sbr.rel (%p216) target = $region66
        $region65: #{flexible_categorical_forward.2} parent=61 // pred_region
          _
        $region66: #{flexible_categorical_forward.2} parent=61 // pred_fallthru
          _
        %p219 = pneg %p30
        %p220 = pneg %p27
        %s221 = sand.u32 %s43, 1
        %s222 = sand.u32 %s43, 1
        %s223 = smul.addr %s222, 128
        %s224 = scalar_lea.vmem [#allocation3], %s223
        %p225 = pneg %p56
        %p226 = pneg %p53
        %p227 = pneg %p82
        %p228 = pneg %p79
        %s229 = sand.u32 %s69, 1
        %s230 = sand.u32 %s69, 1
        %s231 = smul.addr %s230, 128
        %s232 = scalar_lea.vmem [#allocation4], %s231
        %v233 = vld [vmem:[%s215] sm:$0xff]
        %v234 = vld [vmem:[%s215 + $0x8] sm:$0xff]
        %v235 = vld [vmem:[%s215 + $0x10] sm:$0xff]
        %v236 = vld [vmem:[%s215 + $0x18] sm:$0xff]
        %v237 = vld [vmem:[%s215 + $0x20] sm:$0xff]
        %v238 = vld [vmem:[%s215 + $0x28] sm:$0xff]
        %v239 = vld [vmem:[%s215 + $0x30] sm:$0xff]
        %v240 = vld [vmem:[%s215 + $0x38] sm:$0xff]
        %v241 = vld [vmem:[%s215 + $0x40] sm:$0xff]
        %v242 = vld [vmem:[%s215 + $0x48] sm:$0xff]
        %v243 = vld [vmem:[%s215 + $0x50] sm:$0xff]
        %v244 = vld [vmem:[%s215 + $0x58] sm:$0xff]
        %v245 = vld [vmem:[%s215 + $0x60] sm:$0xff]
        %v246 = vld [vmem:[%s215 + $0x68] sm:$0xff]
        %v247 = vld [vmem:[%s215 + $0x70] sm:$0xff]
        %v248 = vld [vmem:[%s215 + $0x78] sm:$0xff]
        %s249 = sld [smem:[#allocation2]]
        %v250 = vadd.f32 %v233, %v234
        %v251 = vadd.f32 %v250, %v235
        %v252 = vadd.f32 %v251, %v236
        %v253 = vadd.f32 %v252, %v237
        %v254 = vadd.f32 %v253, %v238
        %v255 = vadd.f32 %v254, %v239
        %v256 = vadd.f32 %v255, %v240
        %v257 = vadd.f32 %v256, %v241
        %v258 = vadd.f32 %v257, %v242
        %v259 = vadd.f32 %v258, %v243
        %v260 = vadd.f32 %v259, %v244
        %v261 = vadd.f32 %v260, %v245
        %v262 = vadd.f32 %v261, %v246
        %v263 = vadd.f32 %v262, %v247
        %v264 = vadd.f32 %v263, %v248
        %v265 = vrot.slane %v264, 4
        %v266 = vadd.f32 %v264, %v265
        %v267 = vrot.slane %v266, 2
        %v268 = vadd.f32 %v266, %v267
        %v269 = vrot.slane %v268, 1
        %v270 = vadd.f32 %v268, %v269
        %v271 = vmul.f32 %v233, %v233
        %v272 = vmul.f32 %v234, %v234
        %v273 = vmul.f32 %v235, %v235
        %v274 = vmul.f32 %v236, %v236
        %v275 = vmul.f32 %v237, %v237
        %v276 = vmul.f32 %v238, %v238
        %v277 = vmul.f32 %v239, %v239
        %v278 = vmul.f32 %v240, %v240
        %v279 = vmul.f32 %v241, %v241
        %v280 = vmul.f32 %v242, %v242
        %v281 = vmul.f32 %v243, %v243
        %v282 = vmul.f32 %v244, %v244
        %v283 = vmul.f32 %v245, %v245
        %v284 = vmul.f32 %v246, %v246
        %v285 = vmul.f32 %v247, %v247
        %v286 = vmul.f32 %v248, %v248
        %v287 = vadd.f32 %v271, %v272
        %v288 = vadd.f32 %v287, %v273
        %v289 = vadd.f32 %v288, %v274
        %v290 = vadd.f32 %v289, %v275
        %v291 = vadd.f32 %v290, %v276
        %v292 = vadd.f32 %v291, %v277
        %v293 = vadd.f32 %v292, %v278
        %v294 = vadd.f32 %v293, %v279
        %v295 = vadd.f32 %v294, %v280
        %v296 = vadd.f32 %v295, %v281
        %v297 = vadd.f32 %v296, %v282
        %v298 = vadd.f32 %v297, %v283
        %v299 = vadd.f32 %v298, %v284
        %v300 = vadd.f32 %v299, %v285
        %v301 = vadd.f32 %v300, %v286
        %v302 = vrot.slane %v301, 4
        %v303 = vadd.f32 %v301, %v302
        %v304 = vrot.slane %v303, 2
        %v305 = vadd.f32 %v303, %v304
        %v306 = vrot.slane %v305, 1
        %v307 = vadd.f32 %v305, %v306
        %v308 = vmul.f32 %v270, 0.0078125
        %v309 = vmul.f32 %v270, %v308
        %v310 = vsub.f32 %v307, %v309
        %v311 = vmul.f32 %v310, 0.007874016
        %v312 = vmax.f32 %v311, 0.0
        %v313 = vrsqrt.pop %v312
        %v314 = vmul.f32 %v312, %v313
        %vm315 = vcmp.eq.f32.partialorder %v312, inf
        %v316 = vsel %vm315, %v312, %v314
        %vm317 = vcmp.eq.f32.partialorder %v312, 0.0
        %v318 = vand.u32 %v312, 2147483648
        %v319 = vsel %vm317, %v318, %v316
        %v320 = vmul.f32 %v319, 4.0
        %v321 = vsub.f32 %v308, %v320
        %vm322 = vcmp.ge.f32.partialorder %v233, %v321
        %vm323 = vcmp.ge.f32.partialorder %v234, %v321
        %vm324 = vcmp.ge.f32.partialorder %v235, %v321
        %vm325 = vcmp.ge.f32.partialorder %v236, %v321
        %vm326 = vcmp.ge.f32.partialorder %v237, %v321
        %vm327 = vcmp.ge.f32.partialorder %v238, %v321
        %vm328 = vcmp.ge.f32.partialorder %v239, %v321
        %vm329 = vcmp.ge.f32.partialorder %v240, %v321
        %vm330 = vcmp.ge.f32.partialorder %v241, %v321
        %vm331 = vcmp.ge.f32.partialorder %v242, %v321
        %vm332 = vcmp.ge.f32.partialorder %v243, %v321
        %vm333 = vcmp.ge.f32.partialorder %v244, %v321
        %vm334 = vcmp.ge.f32.partialorder %v245, %v321
        %vm335 = vcmp.ge.f32.partialorder %v246, %v321
        %vm336 = vcmp.ge.f32.partialorder %v247, %v321
        %vm337 = vcmp.ge.f32.partialorder %v248, %v321
        %v338 = vadd.f32 %v308, %v320
        %vm339 = vcmp.le.f32.partialorder %v233, %v338
        %vm340 = vcmp.le.f32.partialorder %v234, %v338
        %vm341 = vcmp.le.f32.partialorder %v235, %v338
        %vm342 = vcmp.le.f32.partialorder %v236, %v338
        %vm343 = vcmp.le.f32.partialorder %v237, %v338
        %vm344 = vcmp.le.f32.partialorder %v238, %v338
        %vm345 = vcmp.le.f32.partialorder %v239, %v338
        %vm346 = vcmp.le.f32.partialorder %v240, %v338
        %vm347 = vcmp.le.f32.partialorder %v241, %v338
        %vm348 = vcmp.le.f32.partialorder %v242, %v338
        %vm349 = vcmp.le.f32.partialorder %v243, %v338
        %vm350 = vcmp.le.f32.partialorder %v244, %v338
        %vm351 = vcmp.le.f32.partialorder %v245, %v338
        %vm352 = vcmp.le.f32.partialorder %v246, %v338
        %vm353 = vcmp.le.f32.partialorder %v247, %v338
        %vm354 = vcmp.le.f32.partialorder %v248, %v338
        %vm355 = vmand %vm322, %vm339
        %vm356 = vmand %vm323, %vm340
        %vm357 = vmand %vm324, %vm341
        %vm358 = vmand %vm325, %vm342
        %vm359 = vmand %vm326, %vm343
        %vm360 = vmand %vm327, %vm344
        %vm361 = vmand %vm328, %vm345
        %vm362 = vmand %vm329, %vm346
        %vm363 = vmand %vm330, %vm347
        %vm364 = vmand %vm331, %vm348
        %vm365 = vmand %vm332, %vm349
        %vm366 = vmand %vm333, %vm350
        %vm367 = vmand %vm334, %vm351
        %vm368 = vmand %vm335, %vm352
        %vm369 = vmand %vm336, %vm353
        %vm370 = vmand %vm337, %vm354
        %v371 = vsel %vm355, %v233, 0.0
        %v372 = vsel %vm356, %v234, 0.0
        %v373 = vsel %vm357, %v235, 0.0
        %v374 = vsel %vm358, %v236, 0.0
        %v375 = vsel %vm359, %v237, 0.0
        %v376 = vsel %vm360, %v238, 0.0
        %v377 = vsel %vm361, %v239, 0.0
        %v378 = vsel %vm362, %v240, 0.0
        %v379 = vsel %vm363, %v241, 0.0
        %v380 = vsel %vm364, %v242, 0.0
        %v381 = vsel %vm365, %v243, 0.0
        %v382 = vsel %vm366, %v244, 0.0
        %v383 = vsel %vm367, %v245, 0.0
        %v384 = vsel %vm368, %v246, 0.0
        %v385 = vsel %vm369, %v247, 0.0
        %v386 = vsel %vm370, %v248, 0.0
        %v387 = vsel %vm355, 1, 0
        %v388 = vsel %vm356, 1, 0
        %v389 = vsel %vm357, 1, 0
        %v390 = vsel %vm358, 1, 0
        %v391 = vsel %vm359, 1, 0
        %v392 = vsel %vm360, 1, 0
        %v393 = vsel %vm361, 1, 0
        %v394 = vsel %vm362, 1, 0
        %v395 = vsel %vm363, 1, 0
        %v396 = vsel %vm364, 1, 0
        %v397 = vsel %vm365, 1, 0
        %v398 = vsel %vm366, 1, 0
        %v399 = vsel %vm367, 1, 0
        %v400 = vsel %vm368, 1, 0
        %v401 = vsel %vm369, 1, 0
        %v402 = vsel %vm370, 1, 0
        %v403 = vcvt.s32.f32 %v387
        %v404 = vcvt.s32.f32 %v388
        %v405 = vcvt.s32.f32 %v389
        %v406 = vcvt.s32.f32 %v390
        %v407 = vcvt.s32.f32 %v391
        %v408 = vcvt.s32.f32 %v392
        %v409 = vcvt.s32.f32 %v393
        %v410 = vcvt.s32.f32 %v394
        %v411 = vcvt.s32.f32 %v395
        %v412 = vcvt.s32.f32 %v396
        %v413 = vcvt.s32.f32 %v397
        %v414 = vcvt.s32.f32 %v398
        %v415 = vcvt.s32.f32 %v399
        %v416 = vcvt.s32.f32 %v400
        %v417 = vcvt.s32.f32 %v401
        %v418 = vcvt.s32.f32 %v402
        %v419 = vadd.f32 %v403, %v404
        %v420 = vadd.f32 %v419, %v405
        %v421 = vadd.f32 %v420, %v406
        %v422 = vadd.f32 %v421, %v407
        %v423 = vadd.f32 %v422, %v408
        %v424 = vadd.f32 %v423, %v409
        %v425 = vadd.f32 %v424, %v410
        %v426 = vadd.f32 %v425, %v411
        %v427 = vadd.f32 %v426, %v412
        %v428 = vadd.f32 %v427, %v413
        %v429 = vadd.f32 %v428, %v414
        %v430 = vadd.f32 %v429, %v415
        %v431 = vadd.f32 %v430, %v416
        %v432 = vadd.f32 %v431, %v417
        %v433 = vadd.f32 %v432, %v418
        %v434 = vrot.slane %v433, 4
        %v435 = vadd.f32 %v433, %v434
        %v436 = vrot.slane %v435, 2
        %v437 = vadd.f32 %v435, %v436
        %v438 = vrot.slane %v437, 1
        %v439 = vadd.f32 %v437, %v438
        %v440 = vadd.f32 %v371, %v372
        %v441 = vadd.f32 %v440, %v373
        %v442 = vadd.f32 %v441, %v374
        %v443 = vadd.f32 %v442, %v375
        %v444 = vadd.f32 %v443, %v376
        %v445 = vadd.f32 %v444, %v377
        %v446 = vadd.f32 %v445, %v378
        %v447 = vadd.f32 %v446, %v379
        %v448 = vadd.f32 %v447, %v380
        %v449 = vadd.f32 %v448, %v381
        %v450 = vadd.f32 %v449, %v382
        %v451 = vadd.f32 %v450, %v383
        %v452 = vadd.f32 %v451, %v384
        %v453 = vadd.f32 %v452, %v385
        %v454 = vadd.f32 %v453, %v386
        %v455 = vrot.slane %v454, 4
        %v456 = vadd.f32 %v454, %v455
        %v457 = vrot.slane %v456, 2
        %v458 = vadd.f32 %v456, %v457
        %v459 = vrot.slane %v458, 1
        %v460 = vadd.f32 %v458, %v459
        %v461 = vmul.f32 %v371, %v233
        %v462 = vmul.f32 %v372, %v234
        %v463 = vmul.f32 %v373, %v235
        %v464 = vmul.f32 %v374, %v236
        %v465 = vmul.f32 %v375, %v237
        %v466 = vmul.f32 %v376, %v238
        %v467 = vmul.f32 %v377, %v239
        %v468 = vmul.f32 %v378, %v240
        %v469 = vmul.f32 %v379, %v241
        %v470 = vmul.f32 %v380, %v242
        %v471 = vmul.f32 %v381, %v243
        %v472 = vmul.f32 %v382, %v244
        %v473 = vmul.f32 %v383, %v245
        %v474 = vmul.f32 %v384, %v246
        %v475 = vmul.f32 %v385, %v247
        %v476 = vmul.f32 %v386, %v248
        %v477 = vadd.f32 %v461, %v462
        %v478 = vadd.f32 %v477, %v463
        %v479 = vadd.f32 %v478, %v464
        %v480 = vadd.f32 %v479, %v465
        %v481 = vadd.f32 %v480, %v466
        %v482 = vadd.f32 %v481, %v467
        %v483 = vadd.f32 %v482, %v468
        %v484 = vadd.f32 %v483, %v469
        %v485 = vadd.f32 %v484, %v470
        %v486 = vadd.f32 %v485, %v471
        %v487 = vadd.f32 %v486, %v472
        %v488 = vadd.f32 %v487, %v473
        %v489 = vadd.f32 %v488, %v474
        %v490 = vadd.f32 %v489, %v475
        %v491 = vadd.f32 %v490, %v476
        %v492 = vrot.slane %v491, 4
        %v493 = vadd.f32 %v491, %v492
        %v494 = vrot.slane %v493, 2
        %v495 = vadd.f32 %v493, %v494
        %v496 = vrot.slane %v495, 1
        %v497 = vadd.f32 %v495, %v496
        %v498 = vrcp.pop %v439
        %v499 = vmul.f32 %v460, %v498
        %v500 = vmul.f32 %v460, %v499
        %v501 = vsub.f32 %v497, %v500
        %v502 = vsub.f32 %v439, 1.0
        %v503 = vrcp.pop %v502
        %v504 = vmul.f32 %v501, %v503
        %v505 = vmax.f32 %v504, 0.0
        %v506 = vrsqrt.pop %v505
        %v507 = vmul.f32 %v505, %v506
        %vm508 = vcmp.eq.f32.partialorder %v505, inf
        %v509 = vsel %vm508, %v505, %v507
        %vm510 = vcmp.eq.f32.partialorder %v505, 0.0
        %v511 = vand.u32 %v505, 2147483648
        %v512 = vsel %vm510, %v511, %v509
        %v513 = vmul.f32 %v512, 4.0
        %v514 = vand.u32 2147483647, %v233
        %v515 = vand.u32 2147483647, %v234
        %v516 = vand.u32 2147483647, %v235
        %v517 = vand.u32 2147483647, %v236
        %v518 = vand.u32 2147483647, %v237
        %v519 = vand.u32 2147483647, %v238
        %v520 = vand.u32 2147483647, %v239
        %v521 = vand.u32 2147483647, %v240
        %v522 = vand.u32 2147483647, %v241
        %v523 = vand.u32 2147483647, %v242
        %v524 = vand.u32 2147483647, %v243
        %v525 = vand.u32 2147483647, %v244
        %v526 = vand.u32 2147483647, %v245
        %v527 = vand.u32 2147483647, %v246
        %v528 = vand.u32 2147483647, %v247
        %v529 = vand.u32 2147483647, %v248
        %v530 = vadd.f32 %v514, 1.0
        %v531 = vlog2.pop %v530
        %v532 = vmul.f32 %v531, 0.6931472
        %v533 = vmul.f32 -0.5, %v514
        %v534 = vadd.f32 %v533, 1.0
        %v535 = vmul.f32 %v534, %v514
        %v536 = vand.u32 2147483647, %v514
        %vm537 = vcmp.lt.f32.partialorder %v536, 0.0004427343
        %v538 = vsel %vm537, %v535, %v532
        %v539 = vadd.f32 %v515, 1.0
        %v540 = vlog2.pop %v539
        %v541 = vmul.f32 %v540, 0.6931472
        %v542 = vmul.f32 -0.5, %v515
        %v543 = vadd.f32 %v542, 1.0
        %v544 = vmul.f32 %v543, %v515
        %v545 = vand.u32 2147483647, %v515
        %vm546 = vcmp.lt.f32.partialorder %v545, 0.0004427343
        %v547 = vsel %vm546, %v544, %v541
        %v548 = vadd.f32 %v516, 1.0
        %v549 = vlog2.pop %v548
        %v550 = vmul.f32 %v549, 0.6931472
        %v551 = vmul.f32 -0.5, %v516
        %v552 = vadd.f32 %v551, 1.0
        %v553 = vmul.f32 %v552, %v516
        %v554 = vand.u32 2147483647, %v516
        %vm555 = vcmp.lt.f32.partialorder %v554, 0.0004427343
        %v556 = vsel %vm555, %v553, %v550
        %v557 = vadd.f32 %v517, 1.0
        %v558 = vlog2.pop %v557
        %v559 = vmul.f32 %v558, 0.6931472
        %v560 = vmul.f32 -0.5, %v517
        %v561 = vadd.f32 %v560, 1.0
        %v562 = vmul.f32 %v561, %v517
        %v563 = vand.u32 2147483647, %v517
        %vm564 = vcmp.lt.f32.partialorder %v563, 0.0004427343
        %v565 = vsel %vm564, %v562, %v559
        %v566 = vadd.f32 %v518, 1.0
        %v567 = vlog2.pop %v566
        %v568 = vmul.f32 %v567, 0.6931472
        %v569 = vmul.f32 -0.5, %v518
        %v570 = vadd.f32 %v569, 1.0
        %v571 = vmul.f32 %v570, %v518
        %v572 = vand.u32 2147483647, %v518
        %vm573 = vcmp.lt.f32.partialorder %v572, 0.0004427343
        %v574 = vsel %vm573, %v571, %v568
        %v575 = vadd.f32 %v519, 1.0
        %v576 = vlog2.pop %v575
        %v577 = vmul.f32 %v576, 0.6931472
        %v578 = vmul.f32 -0.5, %v519
        %v579 = vadd.f32 %v578, 1.0
        %v580 = vmul.f32 %v579, %v519
        %v581 = vand.u32 2147483647, %v519
        %vm582 = vcmp.lt.f32.partialorder %v581, 0.0004427343
        %v583 = vsel %vm582, %v580, %v577
        %v584 = vadd.f32 %v520, 1.0
        %v585 = vlog2.pop %v584
        %v586 = vmul.f32 %v585, 0.6931472
        %v587 = vmul.f32 -0.5, %v520
        %v588 = vadd.f32 %v587, 1.0
        %v589 = vmul.f32 %v588, %v520
        %v590 = vand.u32 2147483647, %v520
        %vm591 = vcmp.lt.f32.partialorder %v590, 0.0004427343
        %v592 = vsel %vm591, %v589, %v586
        %v593 = vadd.f32 %v521, 1.0
        %v594 = vlog2.pop %v593
        %v595 = vmul.f32 %v594, 0.6931472
        %v596 = vmul.f32 -0.5, %v521
        %v597 = vadd.f32 %v596, 1.0
        %v598 = vmul.f32 %v597, %v521
        %v599 = vand.u32 2147483647, %v521
        %vm600 = vcmp.lt.f32.partialorder %v599, 0.0004427343
        %v601 = vsel %vm600, %v598, %v595
        %v602 = vadd.f32 %v522, 1.0
        %v603 = vlog2.pop %v602
        %v604 = vmul.f32 %v603, 0.6931472
        %v605 = vmul.f32 -0.5, %v522
        %v606 = vadd.f32 %v605, 1.0
        %v607 = vmul.f32 %v606, %v522
        %v608 = vand.u32 2147483647, %v522
        %vm609 = vcmp.lt.f32.partialorder %v608, 0.0004427343
        %v610 = vsel %vm609, %v607, %v604
        %v611 = vadd.f32 %v523, 1.0
        %v612 = vlog2.pop %v611
        %v613 = vmul.f32 %v612, 0.6931472
        %v614 = vmul.f32 -0.5, %v523
        %v615 = vadd.f32 %v614, 1.0
        %v616 = vmul.f32 %v615, %v523
        %v617 = vand.u32 2147483647, %v523
        %vm618 = vcmp.lt.f32.partialorder %v617, 0.0004427343
        %v619 = vsel %vm618, %v616, %v613
        %v620 = vadd.f32 %v524, 1.0
        %v621 = vlog2.pop %v620
        %v622 = vmul.f32 %v621, 0.6931472
        %v623 = vmul.f32 -0.5, %v524
        %v624 = vadd.f32 %v623, 1.0
        %v625 = vmul.f32 %v624, %v524
        %v626 = vand.u32 2147483647, %v524
        %vm627 = vcmp.lt.f32.partialorder %v626, 0.0004427343
        %v628 = vsel %vm627, %v625, %v622
        %v629 = vadd.f32 %v525, 1.0
        %v630 = vlog2.pop %v629
        %v631 = vmul.f32 %v630, 0.6931472
        %v632 = vmul.f32 -0.5, %v525
        %v633 = vadd.f32 %v632, 1.0
        %v634 = vmul.f32 %v633, %v525
        %v635 = vand.u32 2147483647, %v525
        %vm636 = vcmp.lt.f32.partialorder %v635, 0.0004427343
        %v637 = vsel %vm636, %v634, %v631
        %v638 = vadd.f32 %v526, 1.0
        %v639 = vlog2.pop %v638
        %v640 = vmul.f32 %v639, 0.6931472
        %v641 = vmul.f32 -0.5, %v526
        %v642 = vadd.f32 %v641, 1.0
        %v643 = vmul.f32 %v642, %v526
        %v644 = vand.u32 2147483647, %v526
        %vm645 = vcmp.lt.f32.partialorder %v644, 0.0004427343
        %v646 = vsel %vm645, %v643, %v640
        %v647 = vadd.f32 %v527, 1.0
        %v648 = vlog2.pop %v647
        %v649 = vmul.f32 %v648, 0.6931472
        %v650 = vmul.f32 -0.5, %v527
        %v651 = vadd.f32 %v650, 1.0
        %v652 = vmul.f32 %v651, %v527
        %v653 = vand.u32 2147483647, %v527
        %vm654 = vcmp.lt.f32.partialorder %v653, 0.0004427343
        %v655 = vsel %vm654, %v652, %v649
        %v656 = vadd.f32 %v528, 1.0
        %v657 = vlog2.pop %v656
        %v658 = vmul.f32 %v657, 0.6931472
        %v659 = vmul.f32 -0.5, %v528
        %v660 = vadd.f32 %v659, 1.0
        %v661 = vmul.f32 %v660, %v528
        %v662 = vand.u32 2147483647, %v528
        %vm663 = vcmp.lt.f32.partialorder %v662, 0.0004427343
        %v664 = vsel %vm663, %v661, %v658
        %v665 = vadd.f32 %v529, 1.0
        %v666 = vlog2.pop %v665
        %v667 = vmul.f32 %v666, 0.6931472
        %v668 = vmul.f32 -0.5, %v529
        %v669 = vadd.f32 %v668, 1.0
        %v670 = vmul.f32 %v669, %v529
        %v671 = vand.u32 2147483647, %v529
        %vm672 = vcmp.lt.f32.partialorder %v671, 0.0004427343
        %v673 = vsel %vm672, %v670, %v667
        %v674 = vsub.f32 %v499, %v513
        %v675 = vsub.f32 %v674, %v538
        %v676 = vsub.f32 %v674, %v547
        %v677 = vsub.f32 %v674, %v556
        %v678 = vsub.f32 %v674, %v565
        %v679 = vsub.f32 %v674, %v574
        %v680 = vsub.f32 %v674, %v583
        %v681 = vsub.f32 %v674, %v592
        %v682 = vsub.f32 %v674, %v601
        %v683 = vsub.f32 %v674, %v610
        %v684 = vsub.f32 %v674, %v619
        %v685 = vsub.f32 %v674, %v628
        %v686 = vsub.f32 %v674, %v637
        %v687 = vsub.f32 %v674, %v646
        %v688 = vsub.f32 %v674, %v655
        %v689 = vsub.f32 %v674, %v664
        %v690 = vsub.f32 %v674, %v673
        %v691 = vmax.f32 %v233, %v675
        %v692 = vmax.f32 %v234, %v676
        %v693 = vmax.f32 %v235, %v677
        %v694 = vmax.f32 %v236, %v678
        %v695 = vmax.f32 %v237, %v679
        %v696 = vmax.f32 %v238, %v680
        %v697 = vmax.f32 %v239, %v681
        %v698 = vmax.f32 %v240, %v682
        %v699 = vmax.f32 %v241, %v683
        %v700 = vmax.f32 %v242, %v684
        %v701 = vmax.f32 %v243, %v685
        %v702 = vmax.f32 %v244, %v686
        %v703 = vmax.f32 %v245, %v687
        %v704 = vmax.f32 %v246, %v688
        %v705 = vmax.f32 %v247, %v689
        %v706 = vmax.f32 %v248, %v690
        %v707 = vadd.f32 %v499, %v513
        %v708 = vadd.f32 %v707, %v538
        %v709 = vadd.f32 %v707, %v547
        %v710 = vadd.f32 %v707, %v556
        %v711 = vadd.f32 %v707, %v565
        %v712 = vadd.f32 %v707, %v574
        %v713 = vadd.f32 %v707, %v583
        %v714 = vadd.f32 %v707, %v592
        %v715 = vadd.f32 %v707, %v601
        %v716 = vadd.f32 %v707, %v610
        %v717 = vadd.f32 %v707, %v619
        %v718 = vadd.f32 %v707, %v628
        %v719 = vadd.f32 %v707, %v637
        %v720 = vadd.f32 %v707, %v646
        %v721 = vadd.f32 %v707, %v655
        %v722 = vadd.f32 %v707, %v664
        %v723 = vadd.f32 %v707, %v673
        %v724 = vmin.f32 %v691, %v708
        %v725 = vmin.f32 %v692, %v709
        %v726 = vmin.f32 %v693, %v710
        %v727 = vmin.f32 %v694, %v711
        %v728 = vmin.f32 %v695, %v712
        %v729 = vmin.f32 %v696, %v713
        %v730 = vmin.f32 %v697, %v714
        %v731 = vmin.f32 %v698, %v715
        %v732 = vmin.f32 %v699, %v716
        %v733 = vmin.f32 %v700, %v717
        %v734 = vmin.f32 %v701, %v718
        %v735 = vmin.f32 %v702, %v719
        %v736 = vmin.f32 %v703, %v720
        %v737 = vmin.f32 %v704, %v721
        %v738 = vmin.f32 %v705, %v722
        %v739 = vmin.f32 %v706, %v723
        %v740 = vadd.f32 %v724, %v725
        %v741 = vadd.f32 %v740, %v726
        %v742 = vadd.f32 %v741, %v727
        %v743 = vadd.f32 %v742, %v728
        %v744 = vadd.f32 %v743, %v729
        %v745 = vadd.f32 %v744, %v730
        %v746 = vadd.f32 %v745, %v731
        %v747 = vadd.f32 %v746, %v732
        %v748 = vadd.f32 %v747, %v733
        %v749 = vadd.f32 %v748, %v734
        %v750 = vadd.f32 %v749, %v735
        %v751 = vadd.f32 %v750, %v736
        %v752 = vadd.f32 %v751, %v737
        %v753 = vadd.f32 %v752, %v738
        %v754 = vadd.f32 %v753, %v739
        %v755 = vrot.slane %v754, 4
        %v756 = vadd.f32 %v754, %v755
        %v757 = vrot.slane %v756, 2
        %v758 = vadd.f32 %v756, %v757
        %v759 = vrot.slane %v758, 1
        %v760 = vadd.f32 %v758, %v759
        %v761 = vmul.f32 %v724, %v724
        %v762 = vmul.f32 %v725, %v725
        %v763 = vmul.f32 %v726, %v726
        %v764 = vmul.f32 %v727, %v727
        %v765 = vmul.f32 %v728, %v728
        %v766 = vmul.f32 %v729, %v729
        %v767 = vmul.f32 %v730, %v730
        %v768 = vmul.f32 %v731, %v731
        %v769 = vmul.f32 %v732, %v732
        %v770 = vmul.f32 %v733, %v733
        %v771 = vmul.f32 %v734, %v734
        %v772 = vmul.f32 %v735, %v735
        %v773 = vmul.f32 %v736, %v736
        %v774 = vmul.f32 %v737, %v737
        %v775 = vmul.f32 %v738, %v738
        %v776 = vmul.f32 %v739, %v739
        %v777 = vadd.f32 %v761, %v762
        %v778 = vadd.f32 %v777, %v763
        %v779 = vadd.f32 %v778, %v764
        %v780 = vadd.f32 %v779, %v765
        %v781 = vadd.f32 %v780, %v766
        %v782 = vadd.f32 %v781, %v767
        %v783 = vadd.f32 %v782, %v768
        %v784 = vadd.f32 %v783, %v769
        %v785 = vadd.f32 %v784, %v770
        %v786 = vadd.f32 %v785, %v771
        %v787 = vadd.f32 %v786, %v772
        %v788 = vadd.f32 %v787, %v773
        %v789 = vadd.f32 %v788, %v774
        %v790 = vadd.f32 %v789, %v775
        %v791 = vadd.f32 %v790, %v776
        %v792 = vrot.slane %v791, 4
        %v793 = vadd.f32 %v791, %v792
        %v794 = vrot.slane %v793, 2
        %v795 = vadd.f32 %v793, %v794
        %v796 = vrot.slane %v795, 1
        %v797 = vadd.f32 %v795, %v796
        %v798 = vmul.f32 %v760, 0.0078125
        %v799 = vmul.f32 %v760, %v798
        %v800 = vsub.f32 %v797, %v799
        %v801 = vmul.f32 %v800, 0.007874016
        %v802 = vmax.f32 %v801, 0.0
        %v803 = vrsqrt.pop %v802
        %v804 = vmul.f32 %v802, %v803
        %vm805 = vcmp.eq.f32.partialorder %v802, inf
        %v806 = vsel %vm805, %v802, %v804
        %vm807 = vcmp.eq.f32.partialorder %v802, 0.0
        %v808 = vand.u32 %v802, 2147483648
        %v809 = vsel %vm807, %v808, %v806
        %v810 = vadd.f32 %v809, 1e-06
        %v811 = vrcp.pop %v810
        %v812 = vmul.f32 1.0, %v811
        %v813 = vsub.f32 %v724, %v798
        %v814 = vsub.f32 %v725, %v798
        %v815 = vsub.f32 %v726, %v798
        %v816 = vsub.f32 %v727, %v798
        %v817 = vsub.f32 %v728, %v798
        %v818 = vsub.f32 %v729, %v798
        %v819 = vsub.f32 %v730, %v798
        %v820 = vsub.f32 %v731, %v798
        %v821 = vsub.f32 %v732, %v798
        %v822 = vsub.f32 %v733, %v798
        %v823 = vsub.f32 %v734, %v798
        %v824 = vsub.f32 %v735, %v798
        %v825 = vsub.f32 %v736, %v798
        %v826 = vsub.f32 %v737, %v798
        %v827 = vsub.f32 %v738, %v798
        %v828 = vsub.f32 %v739, %v798
        %v829 = vstv %s249
        %v830 = vmul.f32 %v812, %v829
        %v831 = vmul.f32 %v813, %v830
        %v832 = vmul.f32 %v814, %v830
        %v833 = vmul.f32 %v815, %v830
        %v834 = vmul.f32 %v816, %v830
        %v835 = vmul.f32 %v817, %v830
        %v836 = vmul.f32 %v818, %v830
        %v837 = vmul.f32 %v819, %v830
        %v838 = vmul.f32 %v820, %v830
        %v839 = vmul.f32 %v821, %v830
        %v840 = vmul.f32 %v822, %v830
        %v841 = vmul.f32 %v823, %v830
        %v842 = vmul.f32 %v824, %v830
        %v843 = vmul.f32 %v825, %v830
        %v844 = vmul.f32 %v826, %v830
        %v845 = vmul.f32 %v827, %v830
        %v846 = vmul.f32 %v828, %v830
        %s847 = smul.f32 %s249, -100.0
        %s848 = smul.f32 %s249, 100.0
        %v849 = vstv %s847
        %v850 = vmax.f32 %v849, %v831
        %v851 = vmax.f32 %v849, %v832
        %v852 = vmax.f32 %v849, %v833
        %v853 = vmax.f32 %v849, %v834
        %v854 = vmax.f32 %v849, %v835
        %v855 = vmax.f32 %v849, %v836
        %v856 = vmax.f32 %v849, %v837
        %v857 = vmax.f32 %v849, %v838
        %v858 = vmax.f32 %v849, %v839
        %v859 = vmax.f32 %v849, %v840
        %v860 = vmax.f32 %v849, %v841
        %v861 = vmax.f32 %v849, %v842
        %v862 = vmax.f32 %v849, %v843
        %v863 = vmax.f32 %v849, %v844
        %v864 = vmax.f32 %v849, %v845
        %v865 = vmax.f32 %v849, %v846
        %v866 = vstv %s848
        %v867 = vmin.f32 %v866, %v850
        %v868 = vmin.f32 %v866, %v851
        %v869 = vmin.f32 %v866, %v852
        %v870 = vmin.f32 %v866, %v853
        %v871 = vmin.f32 %v866, %v854
        %v872 = vmin.f32 %v866, %v855
        %v873 = vmin.f32 %v866, %v856
        %v874 = vmin.f32 %v866, %v857
        %v875 = vmin.f32 %v866, %v858
        %v876 = vmin.f32 %v866, %v859
        %v877 = vmin.f32 %v866, %v860
        %v878 = vmin.f32 %v866, %v861
        %v879 = vmin.f32 %v866, %v862
        %v880 = vmin.f32 %v866, %v863
        %v881 = vmin.f32 %v866, %v864
        %v882 = vmin.f32 %v866, %v865
        %883 = vst [vmem:[%s232] sm:$0xff] %v867
        %884 = vst [vmem:[%s232 + $0x8] sm:$0xff] %v868
        %885 = vst [vmem:[%s232 + $0x10] sm:$0xff] %v869
        %886 = vst [vmem:[%s232 + $0x18] sm:$0xff] %v870
        %887 = vst [vmem:[%s232 + $0x20] sm:$0xff] %v871
        %888 = vst [vmem:[%s232 + $0x28] sm:$0xff] %v872
        %889 = vst [vmem:[%s232 + $0x30] sm:$0xff] %v873
        %890 = vst [vmem:[%s232 + $0x38] sm:$0xff] %v874
        %891 = vst [vmem:[%s232 + $0x40] sm:$0xff] %v875
        %892 = vst [vmem:[%s232 + $0x48] sm:$0xff] %v876
        %893 = vst [vmem:[%s232 + $0x50] sm:$0xff] %v877
        %894 = vst [vmem:[%s232 + $0x58] sm:$0xff] %v878
        %895 = vst [vmem:[%s232 + $0x60] sm:$0xff] %v879
        %896 = vst [vmem:[%s232 + $0x68] sm:$0xff] %v880
        %897 = vst [vmem:[%s232 + $0x70] sm:$0xff] %v881
        %898 = vst [vmem:[%s232 + $0x78] sm:$0xff] %v882
        %s899 = sand.u32 %s69, 1
        %s900 = sand.u32 %s69, 1
        %s901 = smul.addr %s900, 128
        %s902 = scalar_lea.vmem [#allocation4], %s901
        // Predicated region
        $region67: #{flexible_categorical_forward.2} parent=61 // pred_check
          %p903 = pneg %p79
        $region68: #{flexible_categorical_forward.2} parent=61 // pred_check_branch
          %905 = sbr.rel (%p903) target = $region70
        $region69: #{flexible_categorical_forward.2} parent=61 // pred_region
          %s906 = smul.addr %s14, 8
          %s907 = scalar_lea.vmem %s2, %s906
          // Predicated region
          $region71: #{flexible_categorical_forward.2} parent=69 // pred_check
            _
          $region72: #{flexible_categorical_forward.2} parent=69 // pred_check_branch
            %909 = sbr.rel (0) target = $region74
          $region73: #{flexible_categorical_forward.2} parent=69 // pred_region
            // Predicated region
            $region75: #{flexible_categorical_forward.2} parent=73 // pred_check
              _
            $region76: #{flexible_categorical_forward.2} parent=73 // pred_check_branch
              %911 = sbr.rel (0) target = $region78
            $region77: #{flexible_categorical_forward.2} parent=73 // pred_region
              // Predicated region
              $region90: #{flexible_categorical_forward.2} parent=77 // pred_check
                _
              $region91: #{flexible_categorical_forward.2} parent=77 // pred_check_branch
                %956 = sbr.rel (0) target = $region93
              $region92: #{flexible_categorical_forward.2} parent=77 // pred_region
                loop: start=0, step=1, limit=1
                $region94: #{flexible_categorical_forward.2} parent=92 // loop_pre_header
                  _
                $region95: #{flexible_categorical_forward.2} parent=92 // loop_header
                  %s958 = sphi 0, %s962
                  %p959 = scmp.ge.s32.totalorder %s958, 1
                  %s963 = sphi %s902, %s902
                  %s964 = sphi %s907, %s907
                $region96: #{flexible_categorical_forward.2} parent=92 // loop_header_branch
                  %961 = sbr.rel (%p959) target = $region100
                $region97: #{flexible_categorical_forward.2} parent=92 // loop_body
                  %v965 = vld [vmem:[%s963] sm:$0xff]
                  %966 = vst [vmem:[%s964] sm:$0xff] %v965
                  %v967 = vld [vmem:[%s963 + $0x8] sm:$0xff]
                  %968 = vst [vmem:[%s964 + $0x10] sm:$0xff] %v967
                  %v969 = vld [vmem:[%s963 + $0x10] sm:$0xff]
                  %970 = vst [vmem:[%s964 + $0x20] sm:$0xff] %v969
                  %v971 = vld [vmem:[%s963 + $0x18] sm:$0xff]
                  %972 = vst [vmem:[%s964 + $0x30] sm:$0xff] %v971
                  %v973 = vld [vmem:[%s963 + $0x20] sm:$0xff]
                  %974 = vst [vmem:[%s964 + $0x40] sm:$0xff] %v973
                  %v975 = vld [vmem:[%s963 + $0x28] sm:$0xff]
                  %976 = vst [vmem:[%s964 + $0x50] sm:$0xff] %v975
                  %v977 = vld [vmem:[%s963 + $0x30] sm:$0xff]
                  %978 = vst [vmem:[%s964 + $0x60] sm:$0xff] %v977
                  %v979 = vld [vmem:[%s963 + $0x38] sm:$0xff]
                  %980 = vst [vmem:[%s964 + $0x70] sm:$0xff] %v979
                  %v981 = vld [vmem:[%s963 + $0x40] sm:$0xff]
                  %982 = vst [vmem:[%s964 + $0x80] sm:$0xff] %v981
                  %v983 = vld [vmem:[%s963 + $0x48] sm:$0xff]
                  %984 = vst [vmem:[%s964 + $0x90] sm:$0xff] %v983
                  %v985 = vld [vmem:[%s963 + $0x50] sm:$0xff]
                  %986 = vst [vmem:[%s964 + $0xa0] sm:$0xff] %v985
                  %v987 = vld [vmem:[%s963 + $0x58] sm:$0xff]
                  %988 = vst [vmem:[%s964 + $0xb0] sm:$0xff] %v987
                  %v989 = vld [vmem:[%s963 + $0x60] sm:$0xff]
                  %990 = vst [vmem:[%s964 + $0xc0] sm:$0xff] %v989
                  %v991 = vld [vmem:[%s963 + $0x68] sm:$0xff]
                  %992 = vst [vmem:[%s964 + $0xd0] sm:$0xff] %v991
                  %v993 = vld [vmem:[%s963 + $0x70] sm:$0xff]
                  %994 = vst [vmem:[%s964 + $0xe0] sm:$0xff] %v993
                  %v995 = vld [vmem:[%s963 + $0x78] sm:$0xff]
                  %996 = vst [vmem:[%s964 + $0xf0] sm:$0xff] %v995
                $region98: #{flexible_categorical_forward.2} parent=92 // loop_footer
                  %s962 = sadd.s32 1, %s958
                $region99: #{flexible_categorical_forward.2} parent=92 // loop_footer_branch
                  %957 = sbr.rel target = $region95
                $region100: #{flexible_categorical_forward.2} parent=92 // loop_exit
                  _
              $region93: #{flexible_categorical_forward.2} parent=77 // pred_fallthru
                _
              // Predicated region
              $region101: #{flexible_categorical_forward.2} parent=77 // pred_check
                _
              $region102: #{flexible_categorical_forward.2} parent=77 // pred_check_branch
                %998 = sbr.rel target = $region104
              $region103: #{flexible_categorical_forward.2} parent=77 // pred_region
                _
              $region104: #{flexible_categorical_forward.2} parent=77 // pred_fallthru
                _
            $region78: #{flexible_categorical_forward.2} parent=73 // pred_fallthru
              _
            // Predicated region
            $region79: #{flexible_categorical_forward.2} parent=73 // pred_check
              _
            $region80: #{flexible_categorical_forward.2} parent=73 // pred_check_branch
              %913 = sbr.rel target = $region82
            $region81: #{flexible_categorical_forward.2} parent=73 // pred_region
              loop: start=0, step=1, limit=1
              $region83: #{flexible_categorical_forward.2} parent=81 // loop_pre_header
                _
              $region84: #{flexible_categorical_forward.2} parent=81 // loop_header
                %s916 = sphi 0, %s920
                %p917 = scmp.ge.s32.totalorder %s916, 1
                %s921 = sphi %s902, %s902
                %s922 = sphi %s907, %s907
              $region85: #{flexible_categorical_forward.2} parent=81 // loop_header_branch
                %919 = sbr.rel (%p917) target = $region89
              $region86: #{flexible_categorical_forward.2} parent=81 // loop_body
                %v923 = vld [vmem:[%s921] sm:$0xff]
                %924 = vst [vmem:[%s922] sm:$0xff] %v923
                %v925 = vld [vmem:[%s921 + $0x8] sm:$0xff]
                %926 = vst [vmem:[%s922 + $0x10] sm:$0xff] %v925
                %v927 = vld [vmem:[%s921 + $0x10] sm:$0xff]
                %928 = vst [vmem:[%s922 + $0x20] sm:$0xff] %v927
                %v929 = vld [vmem:[%s921 + $0x18] sm:$0xff]
                %930 = vst [vmem:[%s922 + $0x30] sm:$0xff] %v929
                %v931 = vld [vmem:[%s921 + $0x20] sm:$0xff]
                %932 = vst [vmem:[%s922 + $0x40] sm:$0xff] %v931
                %v933 = vld [vmem:[%s921 + $0x28] sm:$0xff]
                %934 = vst [vmem:[%s922 + $0x50] sm:$0xff] %v933
                %v935 = vld [vmem:[%s921 + $0x30] sm:$0xff]
                %936 = vst [vmem:[%s922 + $0x60] sm:$0xff] %v935
                %v937 = vld [vmem:[%s921 + $0x38] sm:$0xff]
                %938 = vst [vmem:[%s922 + $0x70] sm:$0xff] %v937
                %v939 = vld [vmem:[%s921 + $0x40] sm:$0xff]
                %940 = vst [vmem:[%s922 + $0x80] sm:$0xff] %v939
                %v941 = vld [vmem:[%s921 + $0x48] sm:$0xff]
                %942 = vst [vmem:[%s922 + $0x90] sm:$0xff] %v941
                %v943 = vld [vmem:[%s921 + $0x50] sm:$0xff]
                %944 = vst [vmem:[%s922 + $0xa0] sm:$0xff] %v943
                %v945 = vld [vmem:[%s921 + $0x58] sm:$0xff]
                %946 = vst [vmem:[%s922 + $0xb0] sm:$0xff] %v945
                %v947 = vld [vmem:[%s921 + $0x60] sm:$0xff]
                %948 = vst [vmem:[%s922 + $0xc0] sm:$0xff] %v947
                %v949 = vld [vmem:[%s921 + $0x68] sm:$0xff]
                %950 = vst [vmem:[%s922 + $0xd0] sm:$0xff] %v949
                %v951 = vld [vmem:[%s921 + $0x70] sm:$0xff]
                %952 = vst [vmem:[%s922 + $0xe0] sm:$0xff] %v951
                %v953 = vld [vmem:[%s921 + $0x78] sm:$0xff]
                %954 = vst [vmem:[%s922 + $0xf0] sm:$0xff] %v953
              $region87: #{flexible_categorical_forward.2} parent=81 // loop_footer
                %s920 = sadd.s32 1, %s916
              $region88: #{flexible_categorical_forward.2} parent=81 // loop_footer_branch
                %915 = sbr.rel target = $region84
              $region89: #{flexible_categorical_forward.2} parent=81 // loop_exit
                _
            $region82: #{flexible_categorical_forward.2} parent=73 // pred_fallthru
              _
          $region74: #{flexible_categorical_forward.2} parent=69 // pred_fallthru
            _
          %999 = vnop
        $region70: #{flexible_categorical_forward.2} parent=61 // pred_fallthru
          _
      $region62: #{flexible_categorical_forward.2} parent=5 // pred_fallthru
        _
      %p1000 = scmp.le.s32.totalorder 2, %s9
      // Predicated region
      $region105: #{flexible_categorical_forward.2} parent=5 // pred_check
        %p1001 = pneg %p1000
      $region106: #{flexible_categorical_forward.2} parent=5 // pred_check_branch
        %1003 = sbr.rel (%p1001) target = $region108
      $region107: #{flexible_categorical_forward.2} parent=5 // pred_region
        %s1004 = ssub.s32 %s9, 2
        // Predicated region
        $region109: #{flexible_categorical_forward.2} parent=107 // pred_check
          %p1005 = pneg %p85
        $region110: #{flexible_categorical_forward.2} parent=107 // pred_check_branch
          %1007 = sbr.rel (%p1005) target = $region112
        $region111: #{flexible_categorical_forward.2} parent=107 // pred_region
          %s1008 = sand.u32 %s70, 1
          %s1009 = sand.u32 %s70, 1
          %s1010 = smul.addr %s1009, 128
          %s1011 = scalar_lea.vmem [#allocation4], %s1010
        $region112: #{flexible_categorical_forward.2} parent=107 // pred_fallthru
          _
      $region108: #{flexible_categorical_forward.2} parent=5 // pred_fallthru
        _
    $region6: #{flexible_categorical_forward.2} parent=1 // loop_footer
      %s13 = sadd.s32 1, %s9
    $region7: #{flexible_categorical_forward.2} parent=1 // loop_footer_branch
      %8 = sbr.rel target = $region3
    $region8: #{flexible_categorical_forward.2} parent=1 // loop_exit
      _

// kernel: flexible_categorical_forward.3
$region0: #{flexible_categorical_forward.3}
  #allocation0 [shape = 'u32[]', space=smem, size = 0x4, offset = 0x4, fixed_abs, tag = 'smem constant byte address 0x4 - core index']
  #allocation1 [shape = 'u32[144,128]{1,0:T(1,128)}', space=vmem, size = 0x12000, scoped, tag = 'internal scratch']
  %s0 = inlined_call_operand.vmem [shape: f32[128,8], index: 0, kind: input, shape index: {}]
  %s1 = inlined_call_operand.vmem [shape: f32[128,8], index: 1, kind: output, shape index: {}]
  %s2 = sld [smem:[#allocation0]]
  $region14: #{flexible_categorical_forward.3} parent=0
    _
  %s4 = ssub.s32 1, %s2
  %s5 = scalar_select 0, %s4, %s2
  // Predicated region
  $region2: #{flexible_categorical_forward.3} parent=0 // pred_check
    _
  $region3: #{flexible_categorical_forward.3} parent=0 // pred_check_branch
    %7 = sbr.rel (0) target = $region5
  $region4: #{flexible_categorical_forward.3} parent=0 // pred_region
    _
  $region5: #{flexible_categorical_forward.3} parent=0 // pred_fallthru
    _
  %v8 = vld [vmem:[%s0] sm:$0xff]
  %v9 = vld [vmem:[%s0 + $0x8] sm:$0xff]
  %v10 = vld [vmem:[%s0 + $0x10] sm:$0xff]
  %v11 = vld [vmem:[%s0 + $0x18] sm:$0xff]
  %v12 = vld [vmem:[%s0 + $0x20] sm:$0xff]
  %v13 = vld [vmem:[%s0 + $0x28] sm:$0xff]
  %v14 = vld [vmem:[%s0 + $0x30] sm:$0xff]
  %v15 = vld [vmem:[%s0 + $0x38] sm:$0xff]
  %v16 = vld [vmem:[%s0 + $0x40] sm:$0xff]
  %v17 = vld [vmem:[%s0 + $0x48] sm:$0xff]
  %v18 = vld [vmem:[%s0 + $0x50] sm:$0xff]
  %v19 = vld [vmem:[%s0 + $0x58] sm:$0xff]
  %v20 = vld [vmem:[%s0 + $0x60] sm:$0xff]
  %v21 = vld [vmem:[%s0 + $0x68] sm:$0xff]
  %v22 = vld [vmem:[%s0 + $0x70] sm:$0xff]
  %v23 = vld [vmem:[%s0 + $0x78] sm:$0xff]
  %vm24 = vcmask 64512
  %v25 = vsel %vm24, %v8, 0.0
  %v26 = vsel %vm24, %v9, 0.0
  %v27 = vadd.f32 %v25, %v26
  %v28 = vsel %vm24, %v10, 0.0
  %v29 = vadd.f32 %v27, %v28
  %v30 = vsel %vm24, %v11, 0.0
  %v31 = vadd.f32 %v29, %v30
  %v32 = vsel %vm24, %v12, 0.0
  %v33 = vadd.f32 %v31, %v32
  %v34 = vsel %vm24, %v13, 0.0
  %v35 = vadd.f32 %v33, %v34
  %v36 = vsel %vm24, %v14, 0.0
  %v37 = vadd.f32 %v35, %v36
  %v38 = vsel %vm24, %v15, 0.0
  %v39 = vadd.f32 %v37, %v38
  %v40 = vsel %vm24, %v16, 0.0
  %v41 = vadd.f32 %v39, %v40
  %v42 = vsel %vm24, %v17, 0.0
  %v43 = vadd.f32 %v41, %v42
  %v44 = vsel %vm24, %v18, 0.0
  %v45 = vadd.f32 %v43, %v44
  %v46 = vsel %vm24, %v19, 0.0
  %v47 = vadd.f32 %v45, %v46
  %v48 = vsel %vm24, %v20, 0.0
  %v49 = vadd.f32 %v47, %v48
  %v50 = vsel %vm24, %v21, 0.0
  %v51 = vadd.f32 %v49, %v50
  %v52 = vsel %vm24, %v22, 0.0
  %v53 = vadd.f32 %v51, %v52
  %v54 = vsel %vm24, %v23, 0.0
  %v55 = vadd.f32 %v53, %v54
  %v56 = vrot.slane %v55, 4
  %v57 = vadd.f32 %v55, %v56
  %v58 = vrot.slane %v57, 2
  %v59 = vadd.f32 %v57, %v58
  %v60 = vrot.slane %v59, 1
  %v61 = vadd.f32 %v59, %v60
  %v62 = vmul.f32 %v8, %v8
  %v63 = vmul.f32 %v9, %v9
  %v64 = vmul.f32 %v10, %v10
  %v65 = vmul.f32 %v11, %v11
  %v66 = vmul.f32 %v12, %v12
  %v67 = vmul.f32 %v13, %v13
  %v68 = vmul.f32 %v14, %v14
  %v69 = vmul.f32 %v15, %v15
  %v70 = vmul.f32 %v16, %v16
  %v71 = vmul.f32 %v17, %v17
  %v72 = vmul.f32 %v18, %v18
  %v73 = vmul.f32 %v19, %v19
  %v74 = vmul.f32 %v20, %v20
  %v75 = vmul.f32 %v21, %v21
  %v76 = vmul.f32 %v22, %v22
  %v77 = vmul.f32 %v23, %v23
  %v78 = vsel %vm24, %v62, 0.0
  %v79 = vsel %vm24, %v63, 0.0
  %v80 = vadd.f32 %v78, %v79
  %v81 = vsel %vm24, %v64, 0.0
  %v82 = vadd.f32 %v80, %v81
  %v83 = vsel %vm24, %v65, 0.0
  %v84 = vadd.f32 %v82, %v83
  %v85 = vsel %vm24, %v66, 0.0
  %v86 = vadd.f32 %v84, %v85
  %v87 = vsel %vm24, %v67, 0.0
  %v88 = vadd.f32 %v86, %v87
  %v89 = vsel %vm24, %v68, 0.0
  %v90 = vadd.f32 %v88, %v89
  %v91 = vsel %vm24, %v69, 0.0
  %v92 = vadd.f32 %v90, %v91
  %v93 = vsel %vm24, %v70, 0.0
  %v94 = vadd.f32 %v92, %v93
  %v95 = vsel %vm24, %v71, 0.0
  %v96 = vadd.f32 %v94, %v95
  %v97 = vsel %vm24, %v72, 0.0
  %v98 = vadd.f32 %v96, %v97
  %v99 = vsel %vm24, %v73, 0.0
  %v100 = vadd.f32 %v98, %v99
  %v101 = vsel %vm24, %v74, 0.0
  %v102 = vadd.f32 %v100, %v101
  %v103 = vsel %vm24, %v75, 0.0
  %v104 = vadd.f32 %v102, %v103
  %v105 = vsel %vm24, %v76, 0.0
  %v106 = vadd.f32 %v104, %v105
  %v107 = vsel %vm24, %v77, 0.0
  %v108 = vadd.f32 %v106, %v107
  %v109 = vrot.slane %v108, 4
  %v110 = vadd.f32 %v108, %v109
  %v111 = vrot.slane %v110, 2
  %v112 = vadd.f32 %v110, %v111
  %v113 = vrot.slane %v112, 1
  %v114 = vadd.f32 %v112, %v113
  %v115 = vmul.f32 %v61, 0.0078125
  %v116 = vmul.f32 %v61, %v115
  %v117 = vsub.f32 %v114, %v116
  %v118 = vmul.f32 %v117, 0.007874016
  %v119 = vmax.f32 %v118, 0.0
  %v120 = vsub.f32 %v8, %v115
  %v121 = vsub.f32 %v9, %v115
  %v122 = vsub.f32 %v10, %v115
  %v123 = vsub.f32 %v11, %v115
  %v124 = vsub.f32 %v12, %v115
  %v125 = vsub.f32 %v13, %v115
  %v126 = vsub.f32 %v14, %v115
  %v127 = vsub.f32 %v15, %v115
  %v128 = vsub.f32 %v16, %v115
  %v129 = vsub.f32 %v17, %v115
  %v130 = vsub.f32 %v18, %v115
  %v131 = vsub.f32 %v19, %v115
  %v132 = vsub.f32 %v20, %v115
  %v133 = vsub.f32 %v21, %v115
  %v134 = vsub.f32 %v22, %v115
  %v135 = vsub.f32 %v23, %v115
  %v136 = vrsqrt.pop %v119
  %v137 = vmul.f32 %v119, %v136
  %vm138 = vcmp.eq.f32.partialorder %v119, inf
  %v139 = vsel %vm138, %v119, %v137
  %vm140 = vcmp.eq.f32.partialorder %v119, 0.0
  %v141 = vand.u32 %v119, 2147483648
  %v142 = vsel %vm140, %v141, %v139
  %v143 = vadd.f32 %v142, 1e-06
  %v144 = vrcp.pop %v143
  %v145 = vmul.f32 1.0, %v144
  %v146 = vmul.f32 %v120, %v145
  %v147 = vmul.f32 %v121, %v145
  %v148 = vmul.f32 %v122, %v145
  %v149 = vmul.f32 %v123, %v145
  %v150 = vmul.f32 %v124, %v145
  %v151 = vmul.f32 %v125, %v145
  %v152 = vmul.f32 %v126, %v145
  %v153 = vmul.f32 %v127, %v145
  %v154 = vmul.f32 %v128, %v145
  %v155 = vmul.f32 %v129, %v145
  %v156 = vmul.f32 %v130, %v145
  %v157 = vmul.f32 %v131, %v145
  %v158 = vmul.f32 %v132, %v145
  %v159 = vmul.f32 %v133, %v145
  %v160 = vmul.f32 %v134, %v145
  %v161 = vmul.f32 %v135, %v145
  %v162 = vmax.f32 %v146, -100.0
  %v163 = vmax.f32 %v147, -100.0
  %v164 = vmax.f32 %v148, -100.0
  %v165 = vmax.f32 %v149, -100.0
  %v166 = vmax.f32 %v150, -100.0
  %v167 = vmax.f32 %v151, -100.0
  %v168 = vmax.f32 %v152, -100.0
  %v169 = vmax.f32 %v153, -100.0
  %v170 = vmax.f32 %v154, -100.0
  %v171 = vmax.f32 %v155, -100.0
  %v172 = vmax.f32 %v156, -100.0
  %v173 = vmax.f32 %v157, -100.0
  %v174 = vmax.f32 %v158, -100.0
  %v175 = vmax.f32 %v159, -100.0
  %v176 = vmax.f32 %v160, -100.0
  %v177 = vmax.f32 %v161, -100.0
  %v178 = vmin.f32 %v162, 100.0
  %v179 = vmin.f32 %v163, 100.0
  %v180 = vmin.f32 %v164, 100.0
  %v181 = vmin.f32 %v165, 100.0
  %v182 = vmin.f32 %v166, 100.0
  %v183 = vmin.f32 %v167, 100.0
  %v184 = vmin.f32 %v168, 100.0
  %v185 = vmin.f32 %v169, 100.0
  %v186 = vmin.f32 %v170, 100.0
  %v187 = vmin.f32 %v171, 100.0
  %v188 = vmin.f32 %v172, 100.0
  %v189 = vmin.f32 %v173, 100.0
  %v190 = vmin.f32 %v174, 100.0
  %v191 = vmin.f32 %v175, 100.0
  %v192 = vmin.f32 %v176, 100.0
  %v193 = vmin.f32 %v177, 100.0
  %v194 = vsel %vm24, %v178, -inf
  %v195 = vsel %vm24, %v179, -inf
  %v196 = vsel %vm24, %v180, -inf
  %v197 = vsel %vm24, %v181, -inf
  %v198 = vsel %vm24, %v182, -inf
  %v199 = vmax.f32 %v194, %v198
  %v200 = vsel %vm24, %v183, -inf
  %v201 = vmax.f32 %v195, %v200
  %v202 = vsel %vm24, %v184, -inf
  %v203 = vmax.f32 %v196, %v202
  %v204 = vsel %vm24, %v185, -inf
  %v205 = vmax.f32 %v197, %v204
  %v206 = vsel %vm24, %v186, -inf
  %v207 = vmax.f32 %v199, %v206
  %v208 = vsel %vm24, %v187, -inf
  %v209 = vmax.f32 %v201, %v208
  %v210 = vsel %vm24, %v188, -inf
  %v211 = vmax.f32 %v203, %v210
  %v212 = vsel %vm24, %v189, -inf
  %v213 = vmax.f32 %v205, %v212
  %v214 = vsel %vm24, %v190, -inf
  %v215 = vmax.f32 %v207, %v214
  %v216 = vsel %vm24, %v191, -inf
  %v217 = vmax.f32 %v209, %v216
  %v218 = vsel %vm24, %v192, -inf
  %v219 = vmax.f32 %v211, %v218
  %v220 = vsel %vm24, %v193, -inf
  %v221 = vmax.f32 %v213, %v220
  %v222 = vmax.f32 %v215, %v217
  %v223 = vmax.f32 %v219, %v221
  %v224 = vmax.f32 %v222, %v223
  %v225 = vrot.slane %v224, 4
  %v226 = vmax.f32 %v224, %v225
  %v227 = vrot.slane %v226, 2
  %v228 = vmax.f32 %v226, %v227
  %v229 = vrot.slane %v228, 1
  %v230 = vmax.f32 %v228, %v229
  %v231 = vsel %vm24, %v178, inf
  %v232 = vsel %vm24, %v179, inf
  %v233 = vsel %vm24, %v180, inf
  %v234 = vsel %vm24, %v181, inf
  %v235 = vsel %vm24, %v182, inf
  %v236 = vmin.f32 %v231, %v235
  %v237 = vsel %vm24, %v183, inf
  %v238 = vmin.f32 %v232, %v237
  %v239 = vsel %vm24, %v184, inf
  %v240 = vmin.f32 %v233, %v239
  %v241 = vsel %vm24, %v185, inf
  %v242 = vmin.f32 %v234, %v241
  %v243 = vsel %vm24, %v186, inf
  %v244 = vmin.f32 %v236, %v243
  %v245 = vsel %vm24, %v187, inf
  %v246 = vmin.f32 %v238, %v245
  %v247 = vsel %vm24, %v188, inf
  %v248 = vmin.f32 %v240, %v247
  %v249 = vsel %vm24, %v189, inf
  %v250 = vmin.f32 %v242, %v249
  %v251 = vsel %vm24, %v190, inf
  %v252 = vmin.f32 %v244, %v251
  %v253 = vsel %vm24, %v191, inf
  %v254 = vmin.f32 %v246, %v253
  %v255 = vsel %vm24, %v192, inf
  %v256 = vmin.f32 %v248, %v255
  %v257 = vsel %vm24, %v193, inf
  %v258 = vmin.f32 %v250, %v257
  %v259 = vmin.f32 %v252, %v254
  %v260 = vmin.f32 %v256, %v258
  %v261 = vmin.f32 %v259, %v260
  %v262 = vrot.slane %v261, 4
  %v263 = vmin.f32 %v261, %v262
  %v264 = vrot.slane %v263, 2
  %v265 = vmin.f32 %v263, %v264
  %v266 = vrot.slane %v265, 1
  %v267 = vmin.f32 %v265, %v266
  %v268 = vsub.f32 %v178, %v267
  %v269 = vsub.f32 %v179, %v267
  %v270 = vsub.f32 %v180, %v267
  %v271 = vsub.f32 %v181, %v267
  %v272 = vsub.f32 %v182, %v267
  %v273 = vsub.f32 %v183, %v267
  %v274 = vsub.f32 %v184, %v267
  %v275 = vsub.f32 %v185, %v267
  %v276 = vsub.f32 %v186, %v267
  %v277 = vsub.f32 %v187, %v267
  %v278 = vsub.f32 %v188, %v267
  %v279 = vsub.f32 %v189, %v267
  %v280 = vsub.f32 %v190, %v267
  %v281 = vsub.f32 %v191, %v267
  %v282 = vsub.f32 %v192, %v267
  %v283 = vsub.f32 %v193, %v267
  %v284 = vsub.f32 %v230, %v267
  %v285 = vrcp.pop %v284
  %v286 = vmul.f32 1.0, %v285
  %v287 = vmul.f32 %v268, %v286
  %v288 = vmul.f32 %v269, %v286
  %v289 = vmul.f32 %v270, %v286
  %v290 = vmul.f32 %v271, %v286
  %v291 = vmul.f32 %v272, %v286
  %v292 = vmul.f32 %v273, %v286
  %v293 = vmul.f32 %v274, %v286
  %v294 = vmul.f32 %v275, %v286
  %v295 = vmul.f32 %v276, %v286
  %v296 = vmul.f32 %v277, %v286
  %v297 = vmul.f32 %v278, %v286
  %v298 = vmul.f32 %v279, %v286
  %v299 = vmul.f32 %v280, %v286
  %v300 = vmul.f32 %v281, %v286
  %v301 = vmul.f32 %v282, %v286
  %v302 = vmul.f32 %v283, %v286
  %303 = vst.msk [vmem:[%s1] sm:$0xff] %vm24, %v287
  %304 = vst.msk [vmem:[%s1 + $0x8] sm:$0xff] %vm24, %v288
  %305 = vst.msk [vmem:[%s1 + $0x10] sm:$0xff] %vm24, %v289
  %306 = vst.msk [vmem:[%s1 + $0x18] sm:$0xff] %vm24, %v290
  %307 = vst.msk [vmem:[%s1 + $0x20] sm:$0xff] %vm24, %v291
  %308 = vst.msk [vmem:[%s1 + $0x28] sm:$0xff] %vm24, %v292
  %309 = vst.msk [vmem:[%s1 + $0x30] sm:$0xff] %vm24, %v293
  %310 = vst.msk [vmem:[%s1 + $0x38] sm:$0xff] %vm24, %v294
  %311 = vst.msk [vmem:[%s1 + $0x40] sm:$0xff] %vm24, %v295
  %312 = vst.msk [vmem:[%s1 + $0x48] sm:$0xff] %vm24, %v296
  %313 = vst.msk [vmem:[%s1 + $0x50] sm:$0xff] %vm24, %v297
  %314 = vst.msk [vmem:[%s1 + $0x58] sm:$0xff] %vm24, %v298
  %315 = vst.msk [vmem:[%s1 + $0x60] sm:$0xff] %vm24, %v299
  %316 = vst.msk [vmem:[%s1 + $0x68] sm:$0xff] %vm24, %v300
  %317 = vst.msk [vmem:[%s1 + $0x70] sm:$0xff] %vm24, %v301
  %318 = vst.msk [vmem:[%s1 + $0x78] sm:$0xff] %vm24, %v302
  // Predicated region
  $region6: #{flexible_categorical_forward.3} parent=0 // pred_check
    _
  $region7: #{flexible_categorical_forward.3} parent=0 // pred_check_branch
    %320 = sbr.rel (0) target = $region9
  $region8: #{flexible_categorical_forward.3} parent=0 // pred_region
    _
  $region9: #{flexible_categorical_forward.3} parent=0 // pred_fallthru
    _
  // Predicated region
  $region10: #{flexible_categorical_forward.3} parent=0 // pred_check
    _
  $region11: #{flexible_categorical_forward.3} parent=0 // pred_check_branch
    %322 = sbr.rel (0) target = $region13
  $region12: #{flexible_categorical_forward.3} parent=0 // pred_region
    _
  $region13: #{flexible_categorical_forward.3} parent=0 // pred_fallthru
    _

</llo_original>
